<compile_context>
chip_gen: v6e
topology: v6e:2x2x1
jax: 0.10.0
libtpu: 0.0.40
codegen_flags: <defaults>
</compile_context>

<pallas_src>
import functools

import jax
import jax.numpy as jnp
from jax.experimental import pallas as pl
from jax.experimental.pallas import tpu as pltpu


def _round_up(x, m):
    return (x + m - 1) // m * m


def _cdiv(a, b):
    return (a + b - 1) // b


# ---------------------------------------------------------------------------
# Pallas kernel: vector quantization for one tile of TM rows.
#   score  = -2 * x @ E + |E|^2           (|x|^2 dropped: constant per row;
#                                          -2 folded into the E table)
#   idx    = first argmin over codes       (PyTorch (-d).max(1) tie-break)
#   q      = one_hot(idx) @ E^T            (3-plane bf16 split -> ~exact f32)
#   dsum   = per-tile sum((q - x)^2)       (fused diff partial)
# ---------------------------------------------------------------------------
def _quantize_kernel(m_total, x_ref, ne2_ref, e2_ref, et_hi_ref, et_mid_ref,
                     et_lo_ref, q_ref, idx_ref, dsum_ref):
    tm, d = x_ref.shape
    kp = ne2_ref.shape[1]

    x = x_ref[...]                                               # (TM, D) f32
    # MXU distance matmul: bf16 operands, f32 accumulation. ne2 holds -2*E.
    xe = jnp.dot(x.astype(jnp.bfloat16), ne2_ref[...],
                 preferred_element_type=jnp.float32)             # (TM, Kp)
    # |E|^2 already contains +1e30 on padded K columns -> they never win.
    dist = e2_ref[...] + xe                                      # (TM, Kp) f32

    col = jax.lax.broadcasted_iota(jnp.int32, (tm, kp), 1)
    min_d = jnp.min(dist, axis=1, keepdims=True)
    cand = jnp.where(dist == min_d, col, jnp.int32(kp))
    idx = jnp.min(cand, axis=1, keepdims=True)                   # first minimum
    onehot = (col == idx).astype(jnp.bfloat16)                   # exact 0/1 in bf16

    # Gather of f32 codebook rows via one-hot matmuls on the three bf16 planes
    # (hi + mid + lo reconstructs the f32 value to within 1 ulp).
    q = jnp.dot(onehot, et_hi_ref[...], preferred_element_type=jnp.float32)
    q = q + jnp.dot(onehot, et_mid_ref[...], preferred_element_type=jnp.float32)
    q = q + jnp.dot(onehot, et_lo_ref[...], preferred_element_type=jnp.float32)

    q_ref[...] = q
    idx_ref[...] = idx

    # Fused diff partial: sum over rows of (q - x)^2.  Rows past M in a
    # partial last tile contain unspecified data -> mask them out (only traced
    # in when M % TM != 0).
    sq = (q - x) * (q - x)
    if m_total % tm:
        row = pl.program_id(0) * tm + jax.lax.broadcasted_iota(
            jnp.int32, (tm, 1), 0)
        sq = jnp.where(row < m_total, sq, 0.0)
    dsum_ref[...] = jnp.sum(sq, axis=0, keepdims=True)[None]     # (1, 1, D)


# ---------------------------------------------------------------------------
# Codebook tables: built once, reused for every forward call.
# ---------------------------------------------------------------------------
def prepare_quantize_tables(embedding):
    """embedding: (D, K) f32 -> dict of padded, pre-cast operands."""
    D, K = embedding.shape
    Kp = _round_up(K, 128)
    e = embedding.astype(jnp.float32)

    # Distance operand: -2*E (exact power-of-two scale) in bf16, K padded to 128.
    neg2e = jnp.zeros((D, Kp), jnp.bfloat16).at[:, :K].set(
        (-2.0 * e).astype(jnp.bfloat16))

    # |E|^2 with the padded-K mask fused in (+1e30 on padded columns).
    e2 = jnp.sum(e * e, axis=0)
    e2_masked = jnp.full((1, Kp), 1e30, jnp.float32).at[0, :K].set(e2)

    # E^T split into three bf16 planes for a near-bit-exact f32 gather.
    et = jnp.zeros((Kp, D), jnp.float32).at[:K, :].set(e.T)
    et_hi = et.astype(jnp.bfloat16)
    r1 = et - et_hi.astype(jnp.float32)
    et_mid = r1.astype(jnp.bfloat16)
    et_lo = (r1 - et_mid.astype(jnp.float32)).astype(jnp.bfloat16)

    return {"neg2e": neg2e, "e2": e2_masked,
            "et_hi": et_hi, "et_mid": et_mid, "et_lo": et_lo}


# ---------------------------------------------------------------------------
# Wrapper: stream raw (M, D) rows, grid over rows, fused diff partials.
# ---------------------------------------------------------------------------
def pallas_quantize(flat, tables):
    """flat: (M, D) f32 -> (quantized (M, D) f32, indices (M,) int32,
                            diff partial sums (grid, 1, D) f32)."""
    M, D = flat.shape
    Kp = tables["neg2e"].shape[1]

    # Row tile: up to 2048 rows (multiple of 8 sublanes); keep >= 2 grid steps
    # and prefer an even step count so both v7x TensorCores get work.
    TM_CAP = 2048
    tm = min(TM_CAP, _round_up(M, 8))
    grid = _cdiv(M, tm)
    if grid == 1 and M > 8:
        tm = _round_up(_cdiv(M, 2), 8)
        grid = _cdiv(M, tm)
    elif grid > 1 and grid % 2 == 1:
        tm_try = _round_up(_cdiv(M, grid + 1), 8)
        if tm_try >= 8:
            tm = tm_try
            grid = _cdiv(M, tm)

    kernel = functools.partial(_quantize_kernel, M)

    q, idx, dsum = pl.pallas_call(
        kernel,
        out_shape=(
            jax.ShapeDtypeStruct((M, D), jnp.float32),     # quantized rows
            jax.ShapeDtypeStruct((M, 1), jnp.int32),       # code indices
            jax.ShapeDtypeStruct((grid, 1, D), jnp.float32),  # diff partials
        ),
        grid_spec=pltpu.PrefetchScalarGridSpec(
            num_scalar_prefetch=0,
            grid=(grid,),
            in_specs=[
                pl.BlockSpec((tm, D), lambda i: (i, 0)),   # streamed x tile (f32)
                pl.BlockSpec((D, Kp), lambda i: (0, 0)),   # resident -2*E (bf16)
                pl.BlockSpec((1, Kp), lambda i: (0, 0)),   # resident |E|^2 (+mask)
                pl.BlockSpec((Kp, D), lambda i: (0, 0)),   # resident E^T hi plane
                pl.BlockSpec((Kp, D), lambda i: (0, 0)),   # resident E^T mid plane
                pl.BlockSpec((Kp, D), lambda i: (0, 0)),   # resident E^T lo plane
                # For very large codebooks, mark the five table specs
                # pipeline_mode=pl.Buffered(1); at K=128 they total ~0.1 MiB.
            ],
            out_specs=(
                pl.BlockSpec((tm, D), lambda i: (i, 0)),
                pl.BlockSpec((tm, 1), lambda i: (i, 0)),
                pl.BlockSpec((1, 1, D), lambda i: (i, 0, 0)),
            ),
        ),
        compiler_params=pltpu.CompilerParams(
            dimension_semantics=("parallel",),
            vmem_limit_bytes=32 * 1024 * 1024,
        ),
    )(flat.astype(jnp.float32), tables["neg2e"], tables["e2"],
      tables["et_hi"], tables["et_mid"], tables["et_lo"])

    return q, idx[:, 0], dsum


# ---------------------------------------------------------------------------
# Quantize.forward (eval-mode) semantics.
# ---------------------------------------------------------------------------
def quantize_forward(inputs, tables):
    """inputs: (..., D). Returns (quantize, diff, embedding_indices)."""
    D = inputs.shape[-1]
    x = inputs.astype(jnp.float32)
    flat = x.reshape(-1, D)

    q_flat, idx_flat, dsum = pallas_quantize(flat, tables)

    quantize = q_flat.reshape(x.shape)              # forward value of the STE
    embedding_indices = idx_flat.reshape(x.shape[:-1])
    diff = jnp.sum(dsum) / jnp.float32(flat.shape[0] * D)

    # TODO(synk): straight-through gradient (dL/dinputs = dL/dquantize via
    # custom_vjp) and training-mode EMA codebook updates are not wired; the
    # forward outputs above match the PyTorch module in eval mode.
    return quantize, diff, embedding_indices


# ---------------------------------------------------------------------------
if __name__ == "__main__":
    batch, spatial = 2, 16
    embedding_dim, num_embeddings = 32, 128

    root = jax.random.PRNGKey(0)
    k_emb, k_x = jax.random.split(root)
    embedding = jax.random.normal(k_emb, (embedding_dim, num_embeddings), jnp.float32)
    inputs = jax.random.normal(k_x, (batch, spatial, spatial, embedding_dim), jnp.float32)

    tables = prepare_quantize_tables(embedding)

    fwd = jax.jit(quantize_forward)
    quantized, diff, indices = fwd(inputs, tables)
    quantized, diff, indices = jax.block_until_ready((quantized, diff, indices))

    # Shape / sanity checks.
    assert quantized.shape == inputs.shape, quantized.shape
    assert diff.shape == (), diff.shape
    assert indices.shape == inputs.shape[:-1], indices.shape
    assert jnp.all(jnp.isfinite(quantized)) and jnp.isfinite(diff)
    assert jnp.all((indices >= 0) & (indices < num_embeddings))

    # Consistency: quantized rows are the (near-bit-exact) f32 codebook columns
    # selected by `indices`.
    flat_in = inputs.reshape(-1, embedding_dim)
    gathered = embedding.T[indices.reshape(-1)]
    assert jnp.allclose(quantized.reshape(-1, embedding_dim), gathered,
                        rtol=1e-5, atol=1e-5)

    # Fused diff matches the reference mean squared difference.
    ref_diff = jnp.mean((gathered - flat_in) ** 2)
    assert jnp.allclose(diff, ref_diff, rtol=1e-4, atol=1e-6), (diff, ref_diff)

    # Near-optimality of the selected codes against true f32 distances
    # (bf16 distance matmul may only flip exact near-ties).
    d_ref = (jnp.sum(flat_in ** 2, axis=1, keepdims=True)
             - 2.0 * flat_in @ embedding
             + jnp.sum(embedding ** 2, axis=0, keepdims=True))
    best = jnp.min(d_ref, axis=1)
    chosen = jnp.take_along_axis(d_ref, indices.reshape(-1, 1), axis=1)[:, 0]
    assert jnp.all(chosen <= best + 1.0)

    print("KERNEL_OK")
</pallas_src>

<mosaic_0001>
module attributes {stable_mosaic.version = 11 : i64} {
  func.func @_quantize_kernel(%arg0: i32, %arg1: memref<256x32xf32, #tpu.memory_space<vmem>>, %arg2: memref<32x128xbf16, #tpu.memory_space<vmem>>, %arg3: memref<1x128xf32, #tpu.memory_space<vmem>>, %arg4: memref<128x32xbf16, #tpu.memory_space<vmem>>, %arg5: memref<128x32xbf16, #tpu.memory_space<vmem>>, %arg6: memref<128x32xbf16, #tpu.memory_space<vmem>>, %arg7: memref<256x32xf32, #tpu.memory_space<vmem>>, %arg8: memref<256x1xi32, #tpu.memory_space<vmem>>, %arg9: memref<1x1x32xf32, #tpu.memory_space<vmem>>) attributes {dimension_semantics = [#tpu.dimension_semantics<parallel>], iteration_bounds = array<i64: 2>, scalar_prefetch = 0 : i64, scratch_operands = 0 : i64, tpu.core_type = #tpu.core_type<tc>, window_params = [{transform_indices = @transform_0, window_bounds = array<i64: 256, 32>}, {pipeline_mode = #tpu.pipeline_mode<synchronous>, transform_indices = @transform_1, window_bounds = array<i64: 32, 128>}, {pipeline_mode = #tpu.pipeline_mode<synchronous>, transform_indices = @transform_2, window_bounds = array<i64: 1, 128>}, {pipeline_mode = #tpu.pipeline_mode<synchronous>, transform_indices = @transform_3, window_bounds = array<i64: 128, 32>}, {pipeline_mode = #tpu.pipeline_mode<synchronous>, transform_indices = @transform_4, window_bounds = array<i64: 128, 32>}, {pipeline_mode = #tpu.pipeline_mode<synchronous>, transform_indices = @transform_5, window_bounds = array<i64: 128, 32>}, {transform_indices = @transform_6, window_bounds = array<i64: 256, 32>}, {transform_indices = @transform_7, window_bounds = array<i64: 256, 1>}, {transform_indices = @transform_8, window_bounds = array<i64: 1, 1, 32>}]} {
    %c0 = arith.constant 0 : index
    %c0_0 = arith.constant 0 : index
    %0 = vector.load %arg1[%c0, %c0_0] : memref<256x32xf32, #tpu.memory_space<vmem>>, vector<256x32xf32>
    %1 = arith.truncf %0 : vector<256x32xf32> to vector<256x32xbf16>
    %c0_1 = arith.constant 0 : index
    %c0_2 = arith.constant 0 : index
    %2 = vector.load %arg2[%c0_1, %c0_2] : memref<32x128xbf16, #tpu.memory_space<vmem>>, vector<32x128xbf16>
    %cst = arith.constant dense<0.000000e+00> : vector<256x128xf32>
    %3 = tpu.matmul %1, %2, %cst {dimension_numbers = #tpu.dot_dimension_numbers<[1], [0], [0], [1], [0, 0, 1, 1], [], []>} : vector<256x32xbf16>, vector<32x128xbf16>, vector<256x128xf32> -> vector<256x128xf32>
    %c0_3 = arith.constant 0 : index
    %c0_4 = arith.constant 0 : index
    %4 = vector.load %arg3[%c0_3, %c0_4] : memref<1x128xf32, #tpu.memory_space<vmem>>, vector<1x128xf32>
    %5 = vector.broadcast %4 : vector<1x128xf32> to vector<256x128xf32>
    %6 = arith.addf %5, %3 : vector<256x128xf32>
    %7 = tpu.iota {dimensions = array<i32: 1>} : vector<256x128xi32>
    %cst_5 = arith.constant dense<0x7F800000> : vector<256xf32>
    %8 = vector.multi_reduction <minimumf>, %6, %cst_5 [1] : vector<256x128xf32> to vector<256xf32>
    %9 = vector.shape_cast %8 : vector<256xf32> to vector<256x1xf32>
    %10 = vector.broadcast %9 : vector<256x1xf32> to vector<256x128xf32>
    %11 = arith.cmpf oeq, %6, %10 : vector<256x128xf32>
    %c128_i32 = arith.constant 128 : i32
    %12 = vector.broadcast %c128_i32 : i32 to vector<256x128xi32>
    %13 = arith.select %11, %7, %12 : vector<256x128xi1>, vector<256x128xi32>
    %cst_6 = arith.constant dense<2147483647> : vector<256xi32>
    %14 = vector.multi_reduction <minsi>, %13, %cst_6 [1] : vector<256x128xi32> to vector<256xi32>
    %15 = vector.shape_cast %14 : vector<256xi32> to vector<256x1xi32>
    %16 = vector.broadcast %15 : vector<256x1xi32> to vector<256x128xi32>
    %17 = arith.cmpi eq, %7, %16 : vector<256x128xi32>
    %18 = arith.extui %17 : vector<256x128xi1> to vector<256x128xi32>
    %19 = arith.sitofp %18 : vector<256x128xi32> to vector<256x128xf32>
    %20 = arith.truncf %19 : vector<256x128xf32> to vector<256x128xbf16>
    %c0_7 = arith.constant 0 : index
    %c0_8 = arith.constant 0 : index
    %21 = vector.load %arg4[%c0_7, %c0_8] : memref<128x32xbf16, #tpu.memory_space<vmem>>, vector<128x32xbf16>
    %cst_9 = arith.constant dense<0.000000e+00> : vector<256x32xf32>
    %22 = tpu.matmul %20, %21, %cst_9 {dimension_numbers = #tpu.dot_dimension_numbers<[1], [0], [0], [1], [0, 0, 1, 1], [], []>} : vector<256x128xbf16>, vector<128x32xbf16>, vector<256x32xf32> -> vector<256x32xf32>
    %c0_10 = arith.constant 0 : index
    %c0_11 = arith.constant 0 : index
    %23 = vector.load %arg5[%c0_10, %c0_11] : memref<128x32xbf16, #tpu.memory_space<vmem>>, vector<128x32xbf16>
    %cst_12 = arith.constant dense<0.000000e+00> : vector<256x32xf32>
    %24 = tpu.matmul %20, %23, %cst_12 {dimension_numbers = #tpu.dot_dimension_numbers<[1], [0], [0], [1], [0, 0, 1, 1], [], []>} : vector<256x128xbf16>, vector<128x32xbf16>, vector<256x32xf32> -> vector<256x32xf32>
    %25 = arith.addf %22, %24 : vector<256x32xf32>
    %c0_13 = arith.constant 0 : index
    %c0_14 = arith.constant 0 : index
    %26 = vector.load %arg6[%c0_13, %c0_14] : memref<128x32xbf16, #tpu.memory_space<vmem>>, vector<128x32xbf16>
    %cst_15 = arith.constant dense<0.000000e+00> : vector<256x32xf32>
    %27 = tpu.matmul %20, %26, %cst_15 {dimension_numbers = #tpu.dot_dimension_numbers<[1], [0], [0], [1], [0, 0, 1, 1], [], []>} : vector<256x128xbf16>, vector<128x32xbf16>, vector<256x32xf32> -> vector<256x32xf32>
    %28 = arith.addf %25, %27 : vector<256x32xf32>
    %c0_16 = arith.constant 0 : index
    %c0_17 = arith.constant 0 : index
    %29 = vector.load %arg7[%c0_16, %c0_17] : memref<256x32xf32, #tpu.memory_space<vmem>>, vector<256x32xf32>
    tpu.vector_store %arg7[%c0_16, %c0_17], %28 {strides = array<i32>} : memref<256x32xf32, #tpu.memory_space<vmem>>, vector<256x32xf32>,
    %c0_18 = arith.constant 0 : index
    %c0_19 = arith.constant 0 : index
    %30 = vector.load %arg8[%c0_18, %c0_19] : memref<256x1xi32, #tpu.memory_space<vmem>>, vector<256x1xi32>
    tpu.vector_store %arg8[%c0_18, %c0_19], %15 {strides = array<i32>} : memref<256x1xi32, #tpu.memory_space<vmem>>, vector<256x1xi32>,
    %31 = arith.subf %28, %0 : vector<256x32xf32>
    %32 = arith.subf %28, %0 : vector<256x32xf32>
    %33 = arith.mulf %31, %32 : vector<256x32xf32>
    %cst_20 = arith.constant dense<0.000000e+00> : vector<32xf32>
    %34 = vector.multi_reduction <add>, %33, %cst_20 [0] : vector<256x32xf32> to vector<32xf32>
    %35 = vector.shape_cast %34 : vector<32xf32> to vector<1x32xf32>
    %36 = vector.shape_cast %35 : vector<1x32xf32> to vector<1x1x32xf32>
    %c0_21 = arith.constant 0 : index
    %c0_22 = arith.constant 0 : index
    %c0_23 = arith.constant 0 : index
    %37 = vector.load %arg9[%c0_21, %c0_22, %c0_23] : memref<1x1x32xf32, #tpu.memory_space<vmem>>, vector<1x1x32xf32>
    tpu.vector_store %arg9[%c0_21, %c0_22, %c0_23], %36 {strides = array<i32>} : memref<1x1x32xf32, #tpu.memory_space<vmem>>, vector<1x1x32xf32>,
    return
  }
  func.func @transform_0(%arg0: i32) -> (i32, i32) {
    %c0_i32 = arith.constant 0 : i32
    %c0_i32_0 = arith.constant 0 : i32
    return %arg0, %c0_i32 : i32, i32
  }
  func.func @transform_1(%arg0: i32) -> (i32, i32) {
    %c0_i32 = arith.constant 0 : i32
    %c0_i32_0 = arith.constant 0 : i32
    %c0_i32_1 = arith.constant 0 : i32
    return %c0_i32, %c0_i32_0 : i32, i32
  }
  func.func @transform_2(%arg0: i32) -> (i32, i32) {
    %c0_i32 = arith.constant 0 : i32
    %c0_i32_0 = arith.constant 0 : i32
    %c0_i32_1 = arith.constant 0 : i32
    return %c0_i32, %c0_i32_0 : i32, i32
  }
  func.func @transform_3(%arg0: i32) -> (i32, i32) {
    %c0_i32 = arith.constant 0 : i32
    %c0_i32_0 = arith.constant 0 : i32
    %c0_i32_1 = arith.constant 0 : i32
    return %c0_i32, %c0_i32_0 : i32, i32
  }
  func.func @transform_4(%arg0: i32) -> (i32, i32) {
    %c0_i32 = arith.constant 0 : i32
    %c0_i32_0 = arith.constant 0 : i32
    %c0_i32_1 = arith.constant 0 : i32
    return %c0_i32, %c0_i32_0 : i32, i32
  }
  func.func @transform_5(%arg0: i32) -> (i32, i32) {
    %c0_i32 = arith.constant 0 : i32
    %c0_i32_0 = arith.constant 0 : i32
    %c0_i32_1 = arith.constant 0 : i32
    return %c0_i32, %c0_i32_0 : i32, i32
  }
  func.func @transform_6(%arg0: i32) -> (i32, i32) {
    %c0_i32 = arith.constant 0 : i32
    %c0_i32_0 = arith.constant 0 : i32
    return %arg0, %c0_i32 : i32, i32
  }
  func.func @transform_7(%arg0: i32) -> (i32, i32) {
    %c0_i32 = arith.constant 0 : i32
    %c0_i32_0 = arith.constant 0 : i32
    return %arg0, %c0_i32 : i32, i32
  }
  func.func @transform_8(%arg0: i32) -> (i32, i32, i32) {
    %c0_i32 = arith.constant 0 : i32
    %c0_i32_0 = arith.constant 0 : i32
    %c0_i32_1 = arith.constant 0 : i32
    return %arg0, %c0_i32, %c0_i32_0 : i32, i32, i32
  }
}

</mosaic_0001>

<llo_original>
// kernel: squeeze.1
$region0: #{squeeze.1}
  %s0 = inlined_call_operand.vmem [shape: s32[512], index: 0, kind: input, shape index: {}]
  %s1 = inlined_call_operand.hbm [shape: s32[2,16,16], index: 1, kind: output, shape index: {}]
  $region1: #{squeeze.1} parent=0
    #allocation0 [shape = 'u8[16384]{0}', space=vmem, size = 0x4000, scoped, tag = 'operand span for operand 1']
    #allocation1 [shape = 's32[1]{0}', space=sflag, size = 0x4, scoped, tag = 'scoped memory for squeeze.1']
    #allocation2 [shape = 'u8[4096]{0}', space=vmem, size = 0x1000, scoped, tag = 'scoped mem for input reshape']
    %2 = vsyncpa [#allocation1], 0
    %s4 = sshll.u32 1, 4
    %s5 = ssub.s32 %s4, 1
    %v6 = vld [vmem:[%s0] sm:%s5]
    %7 = vst [vmem:[#allocation2] sm:%s5] %v6
    %v8 = vld [vmem:[#allocation2] sm:$0xf]
    %vm9 = vcmask 130048
    %10 = vst.msk [vmem:[#allocation0] ss:$8 sm:$0xf] %vm9, %v8
    %v11 = vld [vmem:[#allocation2] sm:$0xf]
    %12 = vrot.lane.b32.xlu0 %v11, 112
    %v13 = vpop.permute.xlu0 %12
    %vm14 = vcmask 130048
    %s15 = scalar_lea.vmem [#allocation0], 1
    %16 = vst.msk [vmem:[%s15] ss:$8 sm:$0xf] %vm14, %v13
    %v17 = vld [vmem:[#allocation2] sm:$0xf]
    %18 = vrot.lane.b32.xlu0 %v17, 96
    %v19 = vpop.permute.xlu0 %18
    %vm20 = vcmask 130048
    %s21 = scalar_lea.vmem [#allocation0], 2
    %22 = vst.msk [vmem:[%s21] ss:$8 sm:$0xf] %vm20, %v19
    %v23 = vld [vmem:[#allocation2] sm:$0xf]
    %24 = vrot.lane.b32.xlu0 %v23, 80
    %v25 = vpop.permute.xlu0 %24
    %vm26 = vcmask 130048
    %s27 = scalar_lea.vmem [#allocation0], 3
    %28 = vst.msk [vmem:[%s27] ss:$8 sm:$0xf] %vm26, %v25
    %v29 = vld [vmem:[#allocation2] sm:$0xf]
    %30 = vrot.lane.b32.xlu0 %v29, 64
    %v31 = vpop.permute.xlu0 %30
    %vm32 = vcmask 130048
    %s33 = scalar_lea.vmem [#allocation0], 4
    %34 = vst.msk [vmem:[%s33] ss:$8 sm:$0xf] %vm32, %v31
    %v35 = vld [vmem:[#allocation2] sm:$0xf]
    %36 = vrot.lane.b32.xlu0 %v35, 48
    %v37 = vpop.permute.xlu0 %36
    %vm38 = vcmask 130048
    %s39 = scalar_lea.vmem [#allocation0], 5
    %40 = vst.msk [vmem:[%s39] ss:$8 sm:$0xf] %vm38, %v37
    %v41 = vld [vmem:[#allocation2] sm:$0xf]
    %42 = vrot.lane.b32.xlu0 %v41, 32
    %v43 = vpop.permute.xlu0 %42
    %vm44 = vcmask 130048
    %s45 = scalar_lea.vmem [#allocation0], 6
    %46 = vst.msk [vmem:[%s45] ss:$8 sm:$0xf] %vm44, %v43
    %v47 = vld [vmem:[#allocation2] sm:$0xf]
    %48 = vrot.lane.b32.xlu0 %v47, 16
    %v49 = vpop.permute.xlu0 %48
    %vm50 = vcmask 130048
    %s51 = scalar_lea.vmem [#allocation0], 7
    %52 = vst.msk [vmem:[%s51] ss:$8 sm:$0xf] %vm50, %v49
    %s54 = ssub.s32 512, 512
    %55 = vsyncadd [#allocation1], %s54
    %s57 = sshll.u32 [#allocation0], 4
    %s58 = int_to_ptr.vmem [resolvable:$true] %s57
    %60 = dma.vmem_to_hbm [thread:$0]  %s58, 512, %s1, [#allocation1]
    %61 = dma.done [#allocation1], 512
    %62 = vsyncpa [#allocation1], 1

// kernel: quantize_forward.1
$region0: #{quantize_forward.1}
  #allocation0 [shape = 'u32[]', space=smem, size = 0x4, offset = 0x4, fixed_abs, tag = 'smem constant byte address 0x4 - core index']
  #allocation1 [shape = 'u32[144,128]{1,0:T(1,128)}', space=vmem, size = 0x12000, scoped, tag = 'internal scratch']
  %s0 = inlined_call_operand.hbm [shape: f32[512,32], index: 0, kind: input, shape index: {}]
  %s1 = inlined_call_operand.vmem [shape: bf16[32,128], index: 1, kind: input, shape index: {}]
  %s2 = inlined_call_operand.vmem [shape: f32[1,128], index: 2, kind: input, shape index: {}]
  %s3 = inlined_call_operand.vmem [shape: bf16[128,32], index: 3, kind: input, shape index: {}]
  %s4 = inlined_call_operand.vmem [shape: bf16[128,32], index: 4, kind: input, shape index: {}]
  %s5 = inlined_call_operand.vmem [shape: bf16[128,32], index: 5, kind: input, shape index: {}]
  %s6 = inlined_call_operand.hbm [shape: f32[512,32], index: 6, kind: output, shape index: {0}]
  %s7 = inlined_call_operand.vmem [shape: s32[512,1], index: 7, kind: output, shape index: {1}]
  %s8 = inlined_call_operand.vmem [shape: f32[2,1,32], index: 8, kind: output, shape index: {2}]
  %9 = xla_tuple %s6, %s7, %s8
  %s10 = sld [smem:[#allocation0]]
  $region77: #{quantize_forward.1} parent=0
    _
  %s12 = ssub.s32 1, %s10
  %s13 = scalar_select 0, %s12, %s10
  $region1: #{quantize_forward.1} parent=0
    #allocation2 [shape = 'u8[262144]{0}', space=vmem, size = 0x40000, scoped, tag = 'input window, operand 0']
    #allocation3 [shape = 's32[2]{0}', space=sflag, size = 0x8, scoped, tag = 'scoped memory for quantize_forward.1']
    #allocation4 [shape = 's32[2]{0}', space=sflag, size = 0x8, scoped, tag = 'scoped memory for quantize_forward.1']
    #allocation5 [shape = 'u8[262144]{0}', space=vmem, size = 0x40000, scoped, tag = 'output window, operand 0']
    %14 = vsyncpa [#allocation3], 0
    %s15 = scalar_lea.sflag [#allocation3], 1
    %16 = vsyncpa %s15, 0
    %17 = vsyncpa [#allocation4], 0
    %s18 = scalar_lea.sflag [#allocation4], 1
    %19 = vsyncpa %s18, 0
    loop: start=0, step=1, limit=4
    $region2: #{quantize_forward.1} parent=1 // loop_pre_header
      _
    $region3: #{quantize_forward.1} parent=1 // loop_header
      %s21 = sphi 0, %s25
      %p22 = scmp.ge.s32.totalorder %s21, 4
      %s31 = sphi 0, %s33
      %s34 = sphi 0, %s31
      %s35 = sphi 0, %s34
      %s51 = sphi 0, %s35
      %s55 = sphi 0, %s55
      %s57 = sphi 0, %s55
      %s58 = sphi 0, %s57
      %s72 = sphi 0, %s58
      %s76 = sphi 0, %s76
      %s78 = sphi 0, %s76
      %s79 = sphi 0, %s78
      %s93 = sphi 0, %s79
      %s97 = sphi 0, %s97
      %s99 = sphi 0, %s97
      %s100 = sphi 0, %s99
      %s114 = sphi 0, %s100
      %s118 = sphi 0, %s118
      %s120 = sphi 0, %s118
      %s121 = sphi 0, %s120
      %s135 = sphi 0, %s121
      %s139 = sphi 0, %s139
      %s141 = sphi 0, %s139
      %s142 = sphi 0, %s141
      %s156 = sphi 0, %s142
      %s162 = sphi 0, %s164
      %s165 = sphi 0, %s162
      %s166 = sphi 0, %s165
      %s182 = sphi 0, %s166
      %s188 = sphi 0, %s190
      %s191 = sphi 0, %s188
      %s192 = sphi 0, %s191
      %s208 = sphi 0, %s192
      %s214 = sphi 0, %s216
      %s217 = sphi 0, %s214
      %s218 = sphi 0, %s217
      %s234 = sphi 0, %s218
    $region4: #{quantize_forward.1} parent=1 // loop_header_branch
      %24 = sbr.rel (%p22) target = $region8
    $region5: #{quantize_forward.1} parent=1 // loop_body
      %s26 = ssub.s32 %s21, 1
      %s27 = ssub.s32 %s21, 2
      %s28 = sadd.s32 %s21, 1
      %s29 = ssub.s32 %s21, %s28
      %p30 = scmp.eq.s32.totalorder %s29, 0
      %s32 = sadd.s32 %s31, 1
      %s33 = scalar_select %p30, %s31, %s32
      %p36 = pneg %p30
      %p37 = scmp.eq.s32.totalorder %s21, 1
      %p38 = por %p36, %p37
      %p39 = scmp.ne.s32.totalorder %s31, %s34
      %p40 = scmp.eq.s32.totalorder %s21, 0
      %p41 = por %p39, %p40
      %p42 = scmp.ne.s32.totalorder %s31, %s34
      %p43 = scmp.eq.s32.totalorder %s26, 1
      %p44 = por %p42, %p43
      %p45 = scmp.ne.s32.totalorder %s34, %s35
      %p46 = scmp.eq.s32.totalorder %s26, 0
      %p47 = por %p45, %p46
      %p48 = scmp.ne.s32.totalorder %s34, %s35
      %p49 = scmp.eq.s32.totalorder %s27, 1
      %p50 = por %p48, %p49
      %p52 = scmp.ne.s32.totalorder %s35, %s51
      %p53 = scmp.eq.s32.totalorder %s27, 0
      %p54 = por %p52, %p53
      %s56 = sadd.s32 %s55, 1
      %p59 = scmp.eq.s32.totalorder %s21, 1
      %p60 = scmp.ne.s32.totalorder %s55, %s57
      %p61 = scmp.eq.s32.totalorder %s21, 0
      %p62 = por %p60, %p61
      %p63 = scmp.ne.s32.totalorder %s55, %s57
      %p64 = scmp.eq.s32.totalorder %s26, 1
      %p65 = por %p63, %p64
      %p66 = scmp.ne.s32.totalorder %s57, %s58
      %p67 = scmp.eq.s32.totalorder %s26, 0
      %p68 = por %p66, %p67
      %p69 = scmp.ne.s32.totalorder %s57, %s58
      %p70 = scmp.eq.s32.totalorder %s27, 1
      %p71 = por %p69, %p70
      %p73 = scmp.ne.s32.totalorder %s58, %s72
      %p74 = scmp.eq.s32.totalorder %s27, 0
      %p75 = por %p73, %p74
      %s77 = sadd.s32 %s76, 1
      %p80 = scmp.eq.s32.totalorder %s21, 1
      %p81 = scmp.ne.s32.totalorder %s76, %s78
      %p82 = scmp.eq.s32.totalorder %s21, 0
      %p83 = por %p81, %p82
      %p84 = scmp.ne.s32.totalorder %s76, %s78
      %p85 = scmp.eq.s32.totalorder %s26, 1
      %p86 = por %p84, %p85
      %p87 = scmp.ne.s32.totalorder %s78, %s79
      %p88 = scmp.eq.s32.totalorder %s26, 0
      %p89 = por %p87, %p88
      %p90 = scmp.ne.s32.totalorder %s78, %s79
      %p91 = scmp.eq.s32.totalorder %s27, 1
      %p92 = por %p90, %p91
      %p94 = scmp.ne.s32.totalorder %s79, %s93
      %p95 = scmp.eq.s32.totalorder %s27, 0
      %p96 = por %p94, %p95
      %s98 = sadd.s32 %s97, 1
      %p101 = scmp.eq.s32.totalorder %s21, 1
      %p102 = scmp.ne.s32.totalorder %s97, %s99
      %p103 = scmp.eq.s32.totalorder %s21, 0
      %p104 = por %p102, %p103
      %p105 = scmp.ne.s32.totalorder %s97, %s99
      %p106 = scmp.eq.s32.totalorder %s26, 1
      %p107 = por %p105, %p106
      %p108 = scmp.ne.s32.totalorder %s99, %s100
      %p109 = scmp.eq.s32.totalorder %s26, 0
      %p110 = por %p108, %p109
      %p111 = scmp.ne.s32.totalorder %s99, %s100
      %p112 = scmp.eq.s32.totalorder %s27, 1
      %p113 = por %p111, %p112
      %p115 = scmp.ne.s32.totalorder %s100, %s114
      %p116 = scmp.eq.s32.totalorder %s27, 0
      %p117 = por %p115, %p116
      %s119 = sadd.s32 %s118, 1
      %p122 = scmp.eq.s32.totalorder %s21, 1
      %p123 = scmp.ne.s32.totalorder %s118, %s120
      %p124 = scmp.eq.s32.totalorder %s21, 0
      %p125 = por %p123, %p124
      %p126 = scmp.ne.s32.totalorder %s118, %s120
      %p127 = scmp.eq.s32.totalorder %s26, 1
      %p128 = por %p126, %p127
      %p129 = scmp.ne.s32.totalorder %s120, %s121
      %p130 = scmp.eq.s32.totalorder %s26, 0
      %p131 = por %p129, %p130
      %p132 = scmp.ne.s32.totalorder %s120, %s121
      %p133 = scmp.eq.s32.totalorder %s27, 1
      %p134 = por %p132, %p133
      %p136 = scmp.ne.s32.totalorder %s121, %s135
      %p137 = scmp.eq.s32.totalorder %s27, 0
      %p138 = por %p136, %p137
      %s140 = sadd.s32 %s139, 1
      %p143 = scmp.eq.s32.totalorder %s21, 1
      %p144 = scmp.ne.s32.totalorder %s139, %s141
      %p145 = scmp.eq.s32.totalorder %s21, 0
      %p146 = por %p144, %p145
      %p147 = scmp.ne.s32.totalorder %s139, %s141
      %p148 = scmp.eq.s32.totalorder %s26, 1
      %p149 = por %p147, %p148
      %p150 = scmp.ne.s32.totalorder %s141, %s142
      %p151 = scmp.eq.s32.totalorder %s26, 0
      %p152 = por %p150, %p151
      %p153 = scmp.ne.s32.totalorder %s141, %s142
      %p154 = scmp.eq.s32.totalorder %s27, 1
      %p155 = por %p153, %p154
      %p157 = scmp.ne.s32.totalorder %s142, %s156
      %p158 = scmp.eq.s32.totalorder %s27, 0
      %p159 = por %p157, %p158
      %s160 = ssub.s32 %s21, %s28
      %p161 = scmp.eq.s32.totalorder %s160, 0
      %s163 = sadd.s32 %s162, 1
      %s164 = scalar_select %p161, %s162, %s163
      %p167 = pneg %p161
      %p168 = scmp.eq.s32.totalorder %s21, 1
      %p169 = por %p167, %p168
      %p170 = scmp.ne.s32.totalorder %s162, %s165
      %p171 = scmp.eq.s32.totalorder %s21, 0
      %p172 = por %p170, %p171
      %p173 = scmp.ne.s32.totalorder %s162, %s165
      %p174 = scmp.eq.s32.totalorder %s26, 1
      %p175 = por %p173, %p174
      %p176 = scmp.ne.s32.totalorder %s165, %s166
      %p177 = scmp.eq.s32.totalorder %s26, 0
      %p178 = por %p176, %p177
      %p179 = scmp.ne.s32.totalorder %s165, %s166
      %p180 = scmp.eq.s32.totalorder %s27, 1
      %p181 = por %p179, %p180
      %p183 = scmp.ne.s32.totalorder %s166, %s182
      %p184 = scmp.eq.s32.totalorder %s27, 0
      %p185 = por %p183, %p184
      %s186 = ssub.s32 %s21, %s28
      %p187 = scmp.eq.s32.totalorder %s186, 0
      %s189 = sadd.s32 %s188, 1
      %s190 = scalar_select %p187, %s188, %s189
      %p193 = pneg %p187
      %p194 = scmp.eq.s32.totalorder %s21, 1
      %p195 = por %p193, %p194
      %p196 = scmp.ne.s32.totalorder %s188, %s191
      %p197 = scmp.eq.s32.totalorder %s21, 0
      %p198 = por %p196, %p197
      %p199 = scmp.ne.s32.totalorder %s188, %s191
      %p200 = scmp.eq.s32.totalorder %s26, 1
      %p201 = por %p199, %p200
      %p202 = scmp.ne.s32.totalorder %s191, %s192
      %p203 = scmp.eq.s32.totalorder %s26, 0
      %p204 = por %p202, %p203
      %p205 = scmp.ne.s32.totalorder %s191, %s192
      %p206 = scmp.eq.s32.totalorder %s27, 1
      %p207 = por %p205, %p206
      %p209 = scmp.ne.s32.totalorder %s192, %s208
      %p210 = scmp.eq.s32.totalorder %s27, 0
      %p211 = por %p209, %p210
      %s212 = ssub.s32 %s21, %s28
      %p213 = scmp.eq.s32.totalorder %s212, 0
      %s215 = sadd.s32 %s214, 1
      %s216 = scalar_select %p213, %s214, %s215
      %p219 = pneg %p213
      %p220 = scmp.eq.s32.totalorder %s21, 1
      %p221 = por %p219, %p220
      %p222 = scmp.ne.s32.totalorder %s214, %s217
      %p223 = scmp.eq.s32.totalorder %s21, 0
      %p224 = por %p222, %p223
      %p225 = scmp.ne.s32.totalorder %s214, %s217
      %p226 = scmp.eq.s32.totalorder %s26, 1
      %p227 = por %p225, %p226
      %p228 = scmp.ne.s32.totalorder %s217, %s218
      %p229 = scmp.eq.s32.totalorder %s26, 0
      %p230 = por %p228, %p229
      %p231 = scmp.ne.s32.totalorder %s217, %s218
      %p232 = scmp.eq.s32.totalorder %s27, 1
      %p233 = por %p231, %p232
      %p235 = scmp.ne.s32.totalorder %s218, %s234
      %p236 = scmp.eq.s32.totalorder %s27, 0
      %p237 = por %p235, %p236
      %p238 = scmp.le.s32.totalorder 1, %s21
      %p239 = scmp.lt.s32.totalorder %s21, 3
      %p240 = pnand %p238, %p239
      %p241 = pneg %p240
      // Predicated region
      $region9: #{quantize_forward.1} parent=5 // pred_check
        _
      $region10: #{quantize_forward.1} parent=5 // pred_check_branch
        %243 = sbr.rel (%p240) target = $region12
      $region11: #{quantize_forward.1} parent=5 // pred_region
        %s244 = ssub.s32 %s21, 1
        // Predicated region
        $region13: #{quantize_forward.1} parent=11 // pred_check
          %p245 = pneg %p68
        $region14: #{quantize_forward.1} parent=11 // pred_check_branch
          %247 = sbr.rel (%p245) target = $region16
        $region15: #{quantize_forward.1} parent=11 // pred_region
          _
        $region16: #{quantize_forward.1} parent=11 // pred_fallthru
          _
        // Predicated region
        $region17: #{quantize_forward.1} parent=11 // pred_check
          %p248 = pneg %p89
        $region18: #{quantize_forward.1} parent=11 // pred_check_branch
          %250 = sbr.rel (%p248) target = $region20
        $region19: #{quantize_forward.1} parent=11 // pred_region
          _
        $region20: #{quantize_forward.1} parent=11 // pred_fallthru
          _
        // Predicated region
        $region21: #{quantize_forward.1} parent=11 // pred_check
          %p251 = pneg %p110
        $region22: #{quantize_forward.1} parent=11 // pred_check_branch
          %253 = sbr.rel (%p251) target = $region24
        $region23: #{quantize_forward.1} parent=11 // pred_region
          _
        $region24: #{quantize_forward.1} parent=11 // pred_fallthru
          _
        // Predicated region
        $region25: #{quantize_forward.1} parent=11 // pred_check
          %p254 = pneg %p131
        $region26: #{quantize_forward.1} parent=11 // pred_check_branch
          %256 = sbr.rel (%p254) target = $region28
        $region27: #{quantize_forward.1} parent=11 // pred_region
          _
        $region28: #{quantize_forward.1} parent=11 // pred_fallthru
          _
        // Predicated region
        $region29: #{quantize_forward.1} parent=11 // pred_check
          %p257 = pneg %p152
        $region30: #{quantize_forward.1} parent=11 // pred_check_branch
          %259 = sbr.rel (%p257) target = $region32
        $region31: #{quantize_forward.1} parent=11 // pred_region
          _
        $region32: #{quantize_forward.1} parent=11 // pred_fallthru
          _
      $region12: #{quantize_forward.1} parent=5 // pred_fallthru
        _
      %p260 = scmp.lt.s32.totalorder %s21, 2
      // Predicated region
      $region33: #{quantize_forward.1} parent=5 // pred_check
        %p261 = pneg %p260
      $region34: #{quantize_forward.1} parent=5 // pred_check_branch
        %263 = sbr.rel (%p261) target = $region36
      $region35: #{quantize_forward.1} parent=5 // pred_region
        // Predicated region
        $region37: #{quantize_forward.1} parent=35 // pred_check
          %p264 = pneg %p41
        $region38: #{quantize_forward.1} parent=35 // pred_check_branch
          %266 = sbr.rel (%p264) target = $region40
        $region39: #{quantize_forward.1} parent=35 // pred_region
          %s267 = sand.u32 %s31, 1
          %s268 = scalar_lea.sflag [#allocation3], %s267
          %s269 = sand.u32 %s31, 1
          %s270 = smul.addr %s269, 256
          %s271 = scalar_lea.vmem [#allocation2], %s270
          %s272 = smul.u32 32, %s21
          %s274 = ssub.s32 4096, 4096
          %275 = vsyncadd %s268, %s274
          %s276 = smul.addr %s272, 128
          %s277 = scalar_lea.hbm %s0, %s276
          %s278 = sshll.u32 %s271, 4
          %s279 = int_to_ptr.vmem [resolvable:$true] %s278
          %284 = dma.hbm_to_vmem [thread:$0]  %s277, 4096, %s279, %s268, 128, 128, 8
        $region40: #{quantize_forward.1} parent=35 // pred_fallthru
          _
      $region36: #{quantize_forward.1} parent=5 // pred_fallthru
        _
      %p285 = scmp.le.s32.totalorder 1, %s21
      %p286 = scmp.lt.s32.totalorder %s21, 3
      %p287 = pnand %p285, %p286
      %p288 = pneg %p287
      // Predicated region
      $region41: #{quantize_forward.1} parent=5 // pred_check
        _
      $region42: #{quantize_forward.1} parent=5 // pred_check_branch
        %290 = sbr.rel (%p287) target = $region44
      $region43: #{quantize_forward.1} parent=5 // pred_region
        %s291 = ssub.s32 %s21, 1
        %s292 = sand.u32 %s34, 1
        %s293 = scalar_lea.sflag [#allocation3], %s292
        %s294 = sand.u32 %s34, 1
        %s295 = smul.addr %s294, 256
        %s296 = scalar_lea.vmem [#allocation2], %s295
        // Predicated region
        $region45: #{quantize_forward.1} parent=43 // pred_check
          %p297 = pneg %p47
        $region46: #{quantize_forward.1} parent=43 // pred_check_branch
          %299 = sbr.rel (%p297) target = $region48
        $region47: #{quantize_forward.1} parent=43 // pred_region
          %300 = dma.done %s293, 4096
        $region48: #{quantize_forward.1} parent=43 // pred_fallthru
          _
        %s301 = sand.u32 %s34, 1
        %s302 = scalar_lea.sflag [#allocation3], %s301
        %s303 = sand.u32 %s34, 1
        %s304 = smul.addr %s303, 256
        %s305 = scalar_lea.vmem [#allocation2], %s304
        %p306 = pneg %p47
        %p307 = pneg %p44
        %p308 = pneg %p68
        %p309 = pneg %p65
        %p310 = pneg %p89
        %p311 = pneg %p86
        %p312 = pneg %p110
        %p313 = pneg %p107
        %p314 = pneg %p131
        %p315 = pneg %p128
        %p316 = pneg %p152
        %p317 = pneg %p149
        %p318 = pneg %p178
        %p319 = pneg %p175
        %s320 = sand.u32 %s165, 1
        %s321 = scalar_lea.sflag [#allocation4], %s320
        %s322 = sand.u32 %s165, 1
        %s323 = smul.addr %s322, 256
        %s324 = scalar_lea.vmem [#allocation5], %s323
        %p325 = pneg %p204
        %p326 = pneg %p201
        %s327 = smul.u32 32, %s26
        %p328 = scmp.lt.s32.totalorder %s327, 63
        %s329 = scalar_select %p328, %s327, 63
        %s330 = smul.addr %s329, 8
        %s331 = scalar_lea.vmem %s7, %s330
        %p332 = pneg %p230
        %p333 = pneg %p227
        %p334 = scmp.lt.s32.totalorder %s26, 1
        %s335 = scalar_select %p334, %s26, 1
        %s336 = scalar_lea.vmem %s8, %s335
        %s337 = smul.u32 32, %s26
        %s338 = smul.u32 32, %s26
        %s339 = smul.u32 32, %s26
        %p340 = scmp.lt.s32.totalorder %s339, 63
        %s341 = scalar_select %p340, %s339, 63
        %s342 = smul.addr %s341, 8
        %s343 = scalar_lea.vmem %s7, %s342
        %s344 = smul.u32 32, %s26
        %p345 = scmp.lt.s32.totalorder %s26, 1
        %s346 = scalar_select %p345, %s26, 1
        %s347 = scalar_lea.vmem %s8, %s346
        %v349 = vld [vmem:[%s296] sm:$0xff]
        %v350 = vld [vmem:[%s296 + $0x8] sm:$0xff]
        %v351 = vld [vmem:[%s296 + $0x10] sm:$0xff]
        %v352 = vld [vmem:[%s296 + $0x18] sm:$0xff]
        %v353 = vld [vmem:[%s296 + $0x20] sm:$0xff]
        %v354 = vld [vmem:[%s296 + $0x28] sm:$0xff]
        %v355 = vld [vmem:[%s296 + $0x30] sm:$0xff]
        %v356 = vld [vmem:[%s296 + $0x38] sm:$0xff]
        %v357 = vld [vmem:[%s296 + $0x40] sm:$0xff]
        %v358 = vld [vmem:[%s296 + $0x48] sm:$0xff]
        %v359 = vld [vmem:[%s296 + $0x50] sm:$0xff]
        %v360 = vld [vmem:[%s296 + $0x58] sm:$0xff]
        %v361 = vld [vmem:[%s296 + $0x60] sm:$0xff]
        %v362 = vld [vmem:[%s296 + $0x68] sm:$0xff]
        %v363 = vld [vmem:[%s296 + $0x70] sm:$0xff]
        %v364 = vld [vmem:[%s296 + $0x78] sm:$0xff]
        %v365 = vld [vmem:[%s296 + $0x80] sm:$0xff]
        %v366 = vld [vmem:[%s296 + $0x88] sm:$0xff]
        %v367 = vld [vmem:[%s296 + $0x90] sm:$0xff]
        %v368 = vld [vmem:[%s296 + $0x98] sm:$0xff]
        %v369 = vld [vmem:[%s296 + $0xa0] sm:$0xff]
        %v370 = vld [vmem:[%s296 + $0xa8] sm:$0xff]
        %v371 = vld [vmem:[%s296 + $0xb0] sm:$0xff]
        %v372 = vld [vmem:[%s296 + $0xb8] sm:$0xff]
        %v373 = vld [vmem:[%s296 + $0xc0] sm:$0xff]
        %v374 = vld [vmem:[%s296 + $0xc8] sm:$0xff]
        %v375 = vld [vmem:[%s296 + $0xd0] sm:$0xff]
        %v376 = vld [vmem:[%s296 + $0xd8] sm:$0xff]
        %v377 = vld [vmem:[%s296 + $0xe0] sm:$0xff]
        %v378 = vld [vmem:[%s296 + $0xe8] sm:$0xff]
        %v379 = vld [vmem:[%s296 + $0xf0] sm:$0xff]
        %v380 = vld [vmem:[%s296 + $0xf8] sm:$0xff]
        %v381 = vpack.c.bf16 %v350, %v349
        %v382 = vpack.c.bf16 %v352, %v351
        %v383 = vpack.c.bf16 %v354, %v353
        %v384 = vpack.c.bf16 %v356, %v355
        %v385 = vpack.c.bf16 %v358, %v357
        %v386 = vpack.c.bf16 %v360, %v359
        %v387 = vpack.c.bf16 %v362, %v361
        %v388 = vpack.c.bf16 %v364, %v363
        %v389 = vpack.c.bf16 %v366, %v365
        %v390 = vpack.c.bf16 %v368, %v367
        %v391 = vpack.c.bf16 %v370, %v369
        %v392 = vpack.c.bf16 %v372, %v371
        %v393 = vpack.c.bf16 %v374, %v373
        %v394 = vpack.c.bf16 %v376, %v375
        %v395 = vpack.c.bf16 %v378, %v377
        %v396 = vpack.c.bf16 %v380, %v379
        %v397 = vld [vmem:[%s1] sm:$0xf]
        %v398 = vld [vmem:[%s1 + $0x4] sm:$0xf]
        %v399 = vld [vmem:[%s1 + $0x8] sm:$0xf]
        %v400 = vld [vmem:[%s1 + $0xc] sm:$0xf]
        %v405 = vunpack.c.l.b16 %v397
        %v406 = vunpack.c.l.b16 %v398
        %v407 = vunpack.c.l.b16 %v399
        %v408 = vunpack.c.l.b16 %v400
        %v409 = vpack.c.b16 %v406, %v405
        %v410 = vpack.c.b16 %v408, %v407
        %vm413 = vcmask 261120
        %v415 = vsel %vm413, %v381, 0
        %v418 = vsel %vm413, %v382, 0
        %v421 = vsel %vm413, %v383, 0
        %v424 = vsel %vm413, %v384, 0
        %v427 = vsel %vm413, %v385, 0
        %v430 = vsel %vm413, %v386, 0
        %v433 = vsel %vm413, %v387, 0
        %v436 = vsel %vm413, %v388, 0
        %v439 = vsel %vm413, %v389, 0
        %v442 = vsel %vm413, %v390, 0
        %v445 = vsel %vm413, %v391, 0
        %v448 = vsel %vm413, %v392, 0
        %v451 = vsel %vm413, %v393, 0
        %v454 = vsel %vm413, %v394, 0
        %v457 = vsel %vm413, %v395, 0
        %v460 = vsel %vm413, %v396, 0
        %462 = vmatprep.subr.bf16.mxu0 0
        %463 = vmatpush1.bf16.msra.mxu0 0
        %464 = vmatprep.subr.bf16.mxu0 0
        %465 = vmatpush1.bf16.msra.mxu0 0
        %466 = vmatprep.subr.bf16.mxu0 0
        %467 = vmatpush1.bf16.msra.mxu0 0
        %468 = vmatprep.subr.bf16.mxu0 0
        %469 = vmatpush1.bf16.msra.mxu0 0
        %470 = vmatprep.subr.bf16.mxu0 0
        %471 = vmatpush1.bf16.msra.mxu0 0
        %472 = vmatprep.subr.bf16.mxu0 0
        %473 = vmatpush1.bf16.msra.mxu0 0
        %474 = vmatprep.subr.bf16.mxu0 0
        %475 = vmatpush1.bf16.msra.mxu0 %v410
        %476 = vmatprep.subr.bf16.mxu0 0
        %477 = vmatpush1.bf16.msra.mxu0 %v409
        %478 = vmatprep.subr.bf16.mxu0 0
        %479 = vmatpush2.bf16.msra.mxu0 0
        %480 = vmatprep.subr.bf16.mxu0 0
        %481 = vmatpush2.bf16.msra.mxu0 0
        %482 = vmatprep.subr.bf16.mxu0 0
        %483 = vmatpush2.bf16.msra.mxu0 0
        %484 = vmatprep.subr.bf16.mxu0 0
        %485 = vmatpush2.bf16.msra.mxu0 0
        %486 = vmatprep.subr.bf16.mxu0 0
        %487 = vmatpush2.bf16.msra.mxu0 0
        %488 = vmatprep.subr.bf16.mxu0 0
        %489 = vmatpush2.bf16.msra.mxu0 0
        %490 = vmatprep.subr.bf16.mxu0 0
        %491 = vmatpush2.bf16.msra.mxu0 0
        %492 = vmatprep.subr.bf16.mxu0 0
        %493 = vmatpush2.bf16.msra.mxu0 0
        %494 = vmatprep.mubr.bf16.mxu0 0
        %495 = vmatmul.mubr.bf16.gmra.mxu0 %v415
        %v496 = vpop.f32.mrf.mxu0
        %v497 = vadd.f32 0.0, %v496
        %v498 = vpop.f32.mrf.mxu0
        %v499 = vpop.f32.mrf.mxu0
        %v500 = vadd.f32 0.0, %v499
        %v501 = vpop.f32.mrf.mxu0
        %502 = vmatprep.mubr.bf16.mxu0 0
        %503 = vmatmul.mubr.bf16.gmra.mxu0 %v418
        %v504 = vpop.f32.mrf.mxu0
        %v505 = vadd.f32 0.0, %v504
        %v506 = vpop.f32.mrf.mxu0
        %v507 = vpop.f32.mrf.mxu0
        %v508 = vadd.f32 0.0, %v507
        %v509 = vpop.f32.mrf.mxu0
        %510 = vmatprep.mubr.bf16.mxu0 0
        %511 = vmatmul.mubr.bf16.gmra.mxu0 %v421
        %v512 = vpop.f32.mrf.mxu0
        %v513 = vadd.f32 0.0, %v512
        %v514 = vpop.f32.mrf.mxu0
        %v515 = vpop.f32.mrf.mxu0
        %v516 = vadd.f32 0.0, %v515
        %v517 = vpop.f32.mrf.mxu0
        %518 = vmatprep.mubr.bf16.mxu0 0
        %519 = vmatmul.mubr.bf16.gmra.mxu0 %v424
        %v520 = vpop.f32.mrf.mxu0
        %v521 = vadd.f32 0.0, %v520
        %v522 = vpop.f32.mrf.mxu0
        %v523 = vpop.f32.mrf.mxu0
        %v524 = vadd.f32 0.0, %v523
        %v525 = vpop.f32.mrf.mxu0
        %526 = vmatprep.mubr.bf16.mxu0 0
        %527 = vmatmul.mubr.bf16.gmra.mxu0 %v427
        %v528 = vpop.f32.mrf.mxu0
        %v529 = vadd.f32 0.0, %v528
        %v530 = vpop.f32.mrf.mxu0
        %v531 = vpop.f32.mrf.mxu0
        %v532 = vadd.f32 0.0, %v531
        %v533 = vpop.f32.mrf.mxu0
        %534 = vmatprep.mubr.bf16.mxu0 0
        %535 = vmatmul.mubr.bf16.gmra.mxu0 %v430
        %v536 = vpop.f32.mrf.mxu0
        %v537 = vadd.f32 0.0, %v536
        %v538 = vpop.f32.mrf.mxu0
        %v539 = vpop.f32.mrf.mxu0
        %v540 = vadd.f32 0.0, %v539
        %v541 = vpop.f32.mrf.mxu0
        %542 = vmatprep.mubr.bf16.mxu0 0
        %543 = vmatmul.mubr.bf16.gmra.mxu0 %v433
        %v544 = vpop.f32.mrf.mxu0
        %v545 = vadd.f32 0.0, %v544
        %v546 = vpop.f32.mrf.mxu0
        %v547 = vpop.f32.mrf.mxu0
        %v548 = vadd.f32 0.0, %v547
        %v549 = vpop.f32.mrf.mxu0
        %550 = vmatprep.mubr.bf16.mxu0 0
        %551 = vmatmul.mubr.bf16.gmra.mxu0 %v436
        %v552 = vpop.f32.mrf.mxu0
        %v553 = vadd.f32 0.0, %v552
        %v554 = vpop.f32.mrf.mxu0
        %v555 = vpop.f32.mrf.mxu0
        %v556 = vadd.f32 0.0, %v555
        %v557 = vpop.f32.mrf.mxu0
        %558 = vmatprep.mubr.bf16.mxu0 0
        %559 = vmatmul.mubr.bf16.gmra.mxu0 %v439
        %v560 = vpop.f32.mrf.mxu0
        %v561 = vadd.f32 0.0, %v560
        %v562 = vpop.f32.mrf.mxu0
        %v563 = vpop.f32.mrf.mxu0
        %v564 = vadd.f32 0.0, %v563
        %v565 = vpop.f32.mrf.mxu0
        %566 = vmatprep.mubr.bf16.mxu0 0
        %567 = vmatmul.mubr.bf16.gmra.mxu0 %v442
        %v568 = vpop.f32.mrf.mxu0
        %v569 = vadd.f32 0.0, %v568
        %v570 = vpop.f32.mrf.mxu0
        %v571 = vpop.f32.mrf.mxu0
        %v572 = vadd.f32 0.0, %v571
        %v573 = vpop.f32.mrf.mxu0
        %574 = vmatprep.mubr.bf16.mxu0 0
        %575 = vmatmul.mubr.bf16.gmra.mxu0 %v445
        %v576 = vpop.f32.mrf.mxu0
        %v577 = vadd.f32 0.0, %v576
        %v578 = vpop.f32.mrf.mxu0
        %v579 = vpop.f32.mrf.mxu0
        %v580 = vadd.f32 0.0, %v579
        %v581 = vpop.f32.mrf.mxu0
        %582 = vmatprep.mubr.bf16.mxu0 0
        %583 = vmatmul.mubr.bf16.gmra.mxu0 %v448
        %v584 = vpop.f32.mrf.mxu0
        %v585 = vadd.f32 0.0, %v584
        %v586 = vpop.f32.mrf.mxu0
        %v587 = vpop.f32.mrf.mxu0
        %v588 = vadd.f32 0.0, %v587
        %v589 = vpop.f32.mrf.mxu0
        %590 = vmatprep.mubr.bf16.mxu0 0
        %591 = vmatmul.mubr.bf16.gmra.mxu0 %v451
        %v592 = vpop.f32.mrf.mxu0
        %v593 = vadd.f32 0.0, %v592
        %v594 = vpop.f32.mrf.mxu0
        %v595 = vpop.f32.mrf.mxu0
        %v596 = vadd.f32 0.0, %v595
        %v597 = vpop.f32.mrf.mxu0
        %598 = vmatprep.mubr.bf16.mxu0 0
        %599 = vmatmul.mubr.bf16.gmra.mxu0 %v454
        %v600 = vpop.f32.mrf.mxu0
        %v601 = vadd.f32 0.0, %v600
        %v602 = vpop.f32.mrf.mxu0
        %v603 = vpop.f32.mrf.mxu0
        %v604 = vadd.f32 0.0, %v603
        %v605 = vpop.f32.mrf.mxu0
        %606 = vmatprep.mubr.bf16.mxu0 0
        %607 = vmatmul.mubr.bf16.gmra.mxu0 %v457
        %v608 = vpop.f32.mrf.mxu0
        %v609 = vadd.f32 0.0, %v608
        %v610 = vpop.f32.mrf.mxu0
        %v611 = vpop.f32.mrf.mxu0
        %v612 = vadd.f32 0.0, %v611
        %v613 = vpop.f32.mrf.mxu0
        %614 = vmatprep.mubr.bf16.mxu0 0
        %615 = vmatmul.mubr.bf16.gmra.mxu0 %v460
        %v616 = vpop.f32.mrf.mxu0
        %v617 = vadd.f32 0.0, %v616
        %v618 = vpop.f32.mrf.mxu0
        %v619 = vpop.f32.mrf.mxu0
        %v620 = vadd.f32 0.0, %v619
        %v621 = vpop.f32.mrf.mxu0
        %622 = vdwg.mxu0
        %v623 = vld [vmem:[%s2] sm:$0x1]
        %v625 = vlaneseq
        %v626 = vshrl.u32 %v625, 7
        %v627 = vsub.s32 0, %v626
        %v628 = vrot.slane %v623, %v627
        %v630 = vadd.f32 %v628, %v497
        %v631 = vadd.f32 %v628, %v500
        %v632 = vadd.f32 %v628, %v505
        %v633 = vadd.f32 %v628, %v508
        %v634 = vadd.f32 %v628, %v513
        %v635 = vadd.f32 %v628, %v516
        %v636 = vadd.f32 %v628, %v521
        %v637 = vadd.f32 %v628, %v524
        %v638 = vadd.f32 %v628, %v529
        %v639 = vadd.f32 %v628, %v532
        %v640 = vadd.f32 %v628, %v537
        %v641 = vadd.f32 %v628, %v540
        %v642 = vadd.f32 %v628, %v545
        %v643 = vadd.f32 %v628, %v548
        %v644 = vadd.f32 %v628, %v553
        %v645 = vadd.f32 %v628, %v556
        %v646 = vadd.f32 %v628, %v561
        %v647 = vadd.f32 %v628, %v564
        %v648 = vadd.f32 %v628, %v569
        %v649 = vadd.f32 %v628, %v572
        %v650 = vadd.f32 %v628, %v577
        %v651 = vadd.f32 %v628, %v580
        %v652 = vadd.f32 %v628, %v585
        %v653 = vadd.f32 %v628, %v588
        %v654 = vadd.f32 %v628, %v593
        %v655 = vadd.f32 %v628, %v596
        %v656 = vadd.f32 %v628, %v601
        %v657 = vadd.f32 %v628, %v604
        %v658 = vadd.f32 %v628, %v609
        %v659 = vadd.f32 %v628, %v612
        %v660 = vadd.f32 %v628, %v617
        %v661 = vadd.f32 %v628, %v620
        %v662 = vlaneseq
        %v663 = vand.u32 %v662, 127
        %664 = vmin.xlane.f32.xlu0 %v630
        %v665 = vpop.xlane.xlu0 %664
        %666 = vmin.xlane.f32.xlu0 %v631
        %v667 = vpop.xlane.xlu0 %666
        %668 = vmin.xlane.f32.xlu0 %v632
        %v669 = vpop.xlane.xlu0 %668
        %670 = vmin.xlane.f32.xlu0 %v633
        %v671 = vpop.xlane.xlu0 %670
        %672 = vmin.xlane.f32.xlu0 %v634
        %v673 = vpop.xlane.xlu0 %672
        %674 = vmin.xlane.f32.xlu0 %v635
        %v675 = vpop.xlane.xlu0 %674
        %676 = vmin.xlane.f32.xlu0 %v636
        %v677 = vpop.xlane.xlu0 %676
        %678 = vmin.xlane.f32.xlu0 %v637
        %v679 = vpop.xlane.xlu0 %678
        %680 = vmin.xlane.f32.xlu0 %v638
        %v681 = vpop.xlane.xlu0 %680
        %682 = vmin.xlane.f32.xlu0 %v639
        %v683 = vpop.xlane.xlu0 %682
        %684 = vmin.xlane.f32.xlu0 %v640
        %v685 = vpop.xlane.xlu0 %684
        %686 = vmin.xlane.f32.xlu0 %v641
        %v687 = vpop.xlane.xlu0 %686
        %688 = vmin.xlane.f32.xlu0 %v642
        %v689 = vpop.xlane.xlu0 %688
        %690 = vmin.xlane.f32.xlu0 %v643
        %v691 = vpop.xlane.xlu0 %690
        %692 = vmin.xlane.f32.xlu0 %v644
        %v693 = vpop.xlane.xlu0 %692
        %694 = vmin.xlane.f32.xlu0 %v645
        %v695 = vpop.xlane.xlu0 %694
        %696 = vmin.xlane.f32.xlu0 %v646
        %v697 = vpop.xlane.xlu0 %696
        %698 = vmin.xlane.f32.xlu0 %v647
        %v699 = vpop.xlane.xlu0 %698
        %700 = vmin.xlane.f32.xlu0 %v648
        %v701 = vpop.xlane.xlu0 %700
        %702 = vmin.xlane.f32.xlu0 %v649
        %v703 = vpop.xlane.xlu0 %702
        %704 = vmin.xlane.f32.xlu0 %v650
        %v705 = vpop.xlane.xlu0 %704
        %706 = vmin.xlane.f32.xlu0 %v651
        %v707 = vpop.xlane.xlu0 %706
        %708 = vmin.xlane.f32.xlu0 %v652
        %v709 = vpop.xlane.xlu0 %708
        %710 = vmin.xlane.f32.xlu0 %v653
        %v711 = vpop.xlane.xlu0 %710
        %712 = vmin.xlane.f32.xlu0 %v654
        %v713 = vpop.xlane.xlu0 %712
        %714 = vmin.xlane.f32.xlu0 %v655
        %v715 = vpop.xlane.xlu0 %714
        %716 = vmin.xlane.f32.xlu0 %v656
        %v717 = vpop.xlane.xlu0 %716
        %718 = vmin.xlane.f32.xlu0 %v657
        %v719 = vpop.xlane.xlu0 %718
        %720 = vmin.xlane.f32.xlu0 %v658
        %v721 = vpop.xlane.xlu0 %720
        %722 = vmin.xlane.f32.xlu0 %v659
        %v723 = vpop.xlane.xlu0 %722
        %724 = vmin.xlane.f32.xlu0 %v660
        %v725 = vpop.xlane.xlu0 %724
        %726 = vmin.xlane.f32.xlu0 %v661
        %v727 = vpop.xlane.xlu0 %726
        %vm728 = vcmp.eq.f32.partialorder %v630, %v665
        %vm729 = vcmp.eq.f32.partialorder %v631, %v667
        %vm730 = vcmp.eq.f32.partialorder %v632, %v669
        %vm731 = vcmp.eq.f32.partialorder %v633, %v671
        %vm732 = vcmp.eq.f32.partialorder %v634, %v673
        %vm733 = vcmp.eq.f32.partialorder %v635, %v675
        %vm734 = vcmp.eq.f32.partialorder %v636, %v677
        %vm735 = vcmp.eq.f32.partialorder %v637, %v679
        %vm736 = vcmp.eq.f32.partialorder %v638, %v681
        %vm737 = vcmp.eq.f32.partialorder %v639, %v683
        %vm738 = vcmp.eq.f32.partialorder %v640, %v685
        %vm739 = vcmp.eq.f32.partialorder %v641, %v687
        %vm740 = vcmp.eq.f32.partialorder %v642, %v689
        %vm741 = vcmp.eq.f32.partialorder %v643, %v691
        %vm742 = vcmp.eq.f32.partialorder %v644, %v693
        %vm743 = vcmp.eq.f32.partialorder %v645, %v695
        %vm744 = vcmp.eq.f32.partialorder %v646, %v697
        %vm745 = vcmp.eq.f32.partialorder %v647, %v699
        %vm746 = vcmp.eq.f32.partialorder %v648, %v701
        %vm747 = vcmp.eq.f32.partialorder %v649, %v703
        %vm748 = vcmp.eq.f32.partialorder %v650, %v705
        %vm749 = vcmp.eq.f32.partialorder %v651, %v707
        %vm750 = vcmp.eq.f32.partialorder %v652, %v709
        %vm751 = vcmp.eq.f32.partialorder %v653, %v711
        %vm752 = vcmp.eq.f32.partialorder %v654, %v713
        %vm753 = vcmp.eq.f32.partialorder %v655, %v715
        %vm754 = vcmp.eq.f32.partialorder %v656, %v717
        %vm755 = vcmp.eq.f32.partialorder %v657, %v719
        %vm756 = vcmp.eq.f32.partialorder %v658, %v721
        %vm757 = vcmp.eq.f32.partialorder %v659, %v723
        %vm758 = vcmp.eq.f32.partialorder %v660, %v725
        %vm759 = vcmp.eq.f32.partialorder %v661, %v727
        %v760 = vsel %vm728, %v663, 128
        %v761 = vsel %vm729, %v663, 128
        %v762 = vsel %vm730, %v663, 128
        %v763 = vsel %vm731, %v663, 128
        %v764 = vsel %vm732, %v663, 128
        %v765 = vsel %vm733, %v663, 128
        %v766 = vsel %vm734, %v663, 128
        %v767 = vsel %vm735, %v663, 128
        %v768 = vsel %vm736, %v663, 128
        %v769 = vsel %vm737, %v663, 128
        %v770 = vsel %vm738, %v663, 128
        %v771 = vsel %vm739, %v663, 128
        %v772 = vsel %vm740, %v663, 128
        %v773 = vsel %vm741, %v663, 128
        %v774 = vsel %vm742, %v663, 128
        %v775 = vsel %vm743, %v663, 128
        %v776 = vsel %vm744, %v663, 128
        %v777 = vsel %vm745, %v663, 128
        %v778 = vsel %vm746, %v663, 128
        %v779 = vsel %vm747, %v663, 128
        %v780 = vsel %vm748, %v663, 128
        %v781 = vsel %vm749, %v663, 128
        %v782 = vsel %vm750, %v663, 128
        %v783 = vsel %vm751, %v663, 128
        %v784 = vsel %vm752, %v663, 128
        %v785 = vsel %vm753, %v663, 128
        %v786 = vsel %vm754, %v663, 128
        %v787 = vsel %vm755, %v663, 128
        %v788 = vsel %vm756, %v663, 128
        %v789 = vsel %vm757, %v663, 128
        %v790 = vsel %vm758, %v663, 128
        %v791 = vsel %vm759, %v663, 128
        %v792 = vand.u32 %v760, 65535
        %v793 = vshra.s32 %v760, 16
        %v794 = vcvt.s32.f32 %v792
        %v795 = vcvt.s32.f32 %v793
        %796 = vmin.xlane.f32.xlu0 %v795
        %v797 = vpop.xlane.xlu0 %796
        %vm798 = vcmp.eq.f32.partialorder %v795, %v797
        %v799 = vsel %vm798, %v794, inf
        %800 = vmin.xlane.f32.xlu0 %v799
        %v801 = vpop.xlane.xlu0 %800
        %v802 = vcvt.f32.s32 %v801
        %v803 = vcvt.f32.s32 %v797
        %v804 = vshll.u32 %v803, 16
        %v805 = vadd.s32 %v804, %v802
        %v806 = vand.u32 %v761, 65535
        %v807 = vshra.s32 %v761, 16
        %v808 = vcvt.s32.f32 %v806
        %v809 = vcvt.s32.f32 %v807
        %810 = vmin.xlane.f32.xlu0 %v809
        %v811 = vpop.xlane.xlu0 %810
        %vm812 = vcmp.eq.f32.partialorder %v809, %v811
        %v813 = vsel %vm812, %v808, inf
        %814 = vmin.xlane.f32.xlu0 %v813
        %v815 = vpop.xlane.xlu0 %814
        %v816 = vcvt.f32.s32 %v815
        %v817 = vcvt.f32.s32 %v811
        %v818 = vshll.u32 %v817, 16
        %v819 = vadd.s32 %v818, %v816
        %v820 = vand.u32 %v762, 65535
        %v821 = vshra.s32 %v762, 16
        %v822 = vcvt.s32.f32 %v820
        %v823 = vcvt.s32.f32 %v821
        %824 = vmin.xlane.f32.xlu0 %v823
        %v825 = vpop.xlane.xlu0 %824
        %vm826 = vcmp.eq.f32.partialorder %v823, %v825
        %v827 = vsel %vm826, %v822, inf
        %828 = vmin.xlane.f32.xlu0 %v827
        %v829 = vpop.xlane.xlu0 %828
        %v830 = vcvt.f32.s32 %v829
        %v831 = vcvt.f32.s32 %v825
        %v832 = vshll.u32 %v831, 16
        %v833 = vadd.s32 %v832, %v830
        %v834 = vand.u32 %v763, 65535
        %v835 = vshra.s32 %v763, 16
        %v836 = vcvt.s32.f32 %v834
        %v837 = vcvt.s32.f32 %v835
        %838 = vmin.xlane.f32.xlu0 %v837
        %v839 = vpop.xlane.xlu0 %838
        %vm840 = vcmp.eq.f32.partialorder %v837, %v839
        %v841 = vsel %vm840, %v836, inf
        %842 = vmin.xlane.f32.xlu0 %v841
        %v843 = vpop.xlane.xlu0 %842
        %v844 = vcvt.f32.s32 %v843
        %v845 = vcvt.f32.s32 %v839
        %v846 = vshll.u32 %v845, 16
        %v847 = vadd.s32 %v846, %v844
        %v848 = vand.u32 %v764, 65535
        %v849 = vshra.s32 %v764, 16
        %v850 = vcvt.s32.f32 %v848
        %v851 = vcvt.s32.f32 %v849
        %852 = vmin.xlane.f32.xlu0 %v851
        %v853 = vpop.xlane.xlu0 %852
        %vm854 = vcmp.eq.f32.partialorder %v851, %v853
        %v855 = vsel %vm854, %v850, inf
        %856 = vmin.xlane.f32.xlu0 %v855
        %v857 = vpop.xlane.xlu0 %856
        %v858 = vcvt.f32.s32 %v857
        %v859 = vcvt.f32.s32 %v853
        %v860 = vshll.u32 %v859, 16
        %v861 = vadd.s32 %v860, %v858
        %v862 = vand.u32 %v765, 65535
        %v863 = vshra.s32 %v765, 16
        %v864 = vcvt.s32.f32 %v862
        %v865 = vcvt.s32.f32 %v863
        %866 = vmin.xlane.f32.xlu0 %v865
        %v867 = vpop.xlane.xlu0 %866
        %vm868 = vcmp.eq.f32.partialorder %v865, %v867
        %v869 = vsel %vm868, %v864, inf
        %870 = vmin.xlane.f32.xlu0 %v869
        %v871 = vpop.xlane.xlu0 %870
        %v872 = vcvt.f32.s32 %v871
        %v873 = vcvt.f32.s32 %v867
        %v874 = vshll.u32 %v873, 16
        %v875 = vadd.s32 %v874, %v872
        %v876 = vand.u32 %v766, 65535
        %v877 = vshra.s32 %v766, 16
        %v878 = vcvt.s32.f32 %v876
        %v879 = vcvt.s32.f32 %v877
        %880 = vmin.xlane.f32.xlu0 %v879
        %v881 = vpop.xlane.xlu0 %880
        %vm882 = vcmp.eq.f32.partialorder %v879, %v881
        %v883 = vsel %vm882, %v878, inf
        %884 = vmin.xlane.f32.xlu0 %v883
        %v885 = vpop.xlane.xlu0 %884
        %v886 = vcvt.f32.s32 %v885
        %v887 = vcvt.f32.s32 %v881
        %v888 = vshll.u32 %v887, 16
        %v889 = vadd.s32 %v888, %v886
        %v890 = vand.u32 %v767, 65535
        %v891 = vshra.s32 %v767, 16
        %v892 = vcvt.s32.f32 %v890
        %v893 = vcvt.s32.f32 %v891
        %894 = vmin.xlane.f32.xlu0 %v893
        %v895 = vpop.xlane.xlu0 %894
        %vm896 = vcmp.eq.f32.partialorder %v893, %v895
        %v897 = vsel %vm896, %v892, inf
        %898 = vmin.xlane.f32.xlu0 %v897
        %v899 = vpop.xlane.xlu0 %898
        %v900 = vcvt.f32.s32 %v899
        %v901 = vcvt.f32.s32 %v895
        %v902 = vshll.u32 %v901, 16
        %v903 = vadd.s32 %v902, %v900
        %v904 = vand.u32 %v768, 65535
        %v905 = vshra.s32 %v768, 16
        %v906 = vcvt.s32.f32 %v904
        %v907 = vcvt.s32.f32 %v905
        %908 = vmin.xlane.f32.xlu0 %v907
        %v909 = vpop.xlane.xlu0 %908
        %vm910 = vcmp.eq.f32.partialorder %v907, %v909
        %v911 = vsel %vm910, %v906, inf
        %912 = vmin.xlane.f32.xlu0 %v911
        %v913 = vpop.xlane.xlu0 %912
        %v914 = vcvt.f32.s32 %v913
        %v915 = vcvt.f32.s32 %v909
        %v916 = vshll.u32 %v915, 16
        %v917 = vadd.s32 %v916, %v914
        %v918 = vand.u32 %v769, 65535
        %v919 = vshra.s32 %v769, 16
        %v920 = vcvt.s32.f32 %v918
        %v921 = vcvt.s32.f32 %v919
        %922 = vmin.xlane.f32.xlu0 %v921
        %v923 = vpop.xlane.xlu0 %922
        %vm924 = vcmp.eq.f32.partialorder %v921, %v923
        %v925 = vsel %vm924, %v920, inf
        %926 = vmin.xlane.f32.xlu0 %v925
        %v927 = vpop.xlane.xlu0 %926
        %v928 = vcvt.f32.s32 %v927
        %v929 = vcvt.f32.s32 %v923
        %v930 = vshll.u32 %v929, 16
        %v931 = vadd.s32 %v930, %v928
        %v932 = vand.u32 %v770, 65535
        %v933 = vshra.s32 %v770, 16
        %v934 = vcvt.s32.f32 %v932
        %v935 = vcvt.s32.f32 %v933
        %936 = vmin.xlane.f32.xlu0 %v935
        %v937 = vpop.xlane.xlu0 %936
        %vm938 = vcmp.eq.f32.partialorder %v935, %v937
        %v939 = vsel %vm938, %v934, inf
        %940 = vmin.xlane.f32.xlu0 %v939
        %v941 = vpop.xlane.xlu0 %940
        %v942 = vcvt.f32.s32 %v941
        %v943 = vcvt.f32.s32 %v937
        %v944 = vshll.u32 %v943, 16
        %v945 = vadd.s32 %v944, %v942
        %v946 = vand.u32 %v771, 65535
        %v947 = vshra.s32 %v771, 16
        %v948 = vcvt.s32.f32 %v946
        %v949 = vcvt.s32.f32 %v947
        %950 = vmin.xlane.f32.xlu0 %v949
        %v951 = vpop.xlane.xlu0 %950
        %vm952 = vcmp.eq.f32.partialorder %v949, %v951
        %v953 = vsel %vm952, %v948, inf
        %954 = vmin.xlane.f32.xlu0 %v953
        %v955 = vpop.xlane.xlu0 %954
        %v956 = vcvt.f32.s32 %v955
        %v957 = vcvt.f32.s32 %v951
        %v958 = vshll.u32 %v957, 16
        %v959 = vadd.s32 %v958, %v956
        %v960 = vand.u32 %v772, 65535
        %v961 = vshra.s32 %v772, 16
        %v962 = vcvt.s32.f32 %v960
        %v963 = vcvt.s32.f32 %v961
        %964 = vmin.xlane.f32.xlu0 %v963
        %v965 = vpop.xlane.xlu0 %964
        %vm966 = vcmp.eq.f32.partialorder %v963, %v965
        %v967 = vsel %vm966, %v962, inf
        %968 = vmin.xlane.f32.xlu0 %v967
        %v969 = vpop.xlane.xlu0 %968
        %v970 = vcvt.f32.s32 %v969
        %v971 = vcvt.f32.s32 %v965
        %v972 = vshll.u32 %v971, 16
        %v973 = vadd.s32 %v972, %v970
        %v974 = vand.u32 %v773, 65535
        %v975 = vshra.s32 %v773, 16
        %v976 = vcvt.s32.f32 %v974
        %v977 = vcvt.s32.f32 %v975
        %978 = vmin.xlane.f32.xlu0 %v977
        %v979 = vpop.xlane.xlu0 %978
        %vm980 = vcmp.eq.f32.partialorder %v977, %v979
        %v981 = vsel %vm980, %v976, inf
        %982 = vmin.xlane.f32.xlu0 %v981
        %v983 = vpop.xlane.xlu0 %982
        %v984 = vcvt.f32.s32 %v983
        %v985 = vcvt.f32.s32 %v979
        %v986 = vshll.u32 %v985, 16
        %v987 = vadd.s32 %v986, %v984
        %v988 = vand.u32 %v774, 65535
        %v989 = vshra.s32 %v774, 16
        %v990 = vcvt.s32.f32 %v988
        %v991 = vcvt.s32.f32 %v989
        %992 = vmin.xlane.f32.xlu0 %v991
        %v993 = vpop.xlane.xlu0 %992
        %vm994 = vcmp.eq.f32.partialorder %v991, %v993
        %v995 = vsel %vm994, %v990, inf
        %996 = vmin.xlane.f32.xlu0 %v995
        %v997 = vpop.xlane.xlu0 %996
        %v998 = vcvt.f32.s32 %v997
        %v999 = vcvt.f32.s32 %v993
        %v1000 = vshll.u32 %v999, 16
        %v1001 = vadd.s32 %v1000, %v998
        %v1002 = vand.u32 %v775, 65535
        %v1003 = vshra.s32 %v775, 16
        %v1004 = vcvt.s32.f32 %v1002
        %v1005 = vcvt.s32.f32 %v1003
        %1006 = vmin.xlane.f32.xlu0 %v1005
        %v1007 = vpop.xlane.xlu0 %1006
        %vm1008 = vcmp.eq.f32.partialorder %v1005, %v1007
        %v1009 = vsel %vm1008, %v1004, inf
        %1010 = vmin.xlane.f32.xlu0 %v1009
        %v1011 = vpop.xlane.xlu0 %1010
        %v1012 = vcvt.f32.s32 %v1011
        %v1013 = vcvt.f32.s32 %v1007
        %v1014 = vshll.u32 %v1013, 16
        %v1015 = vadd.s32 %v1014, %v1012
        %v1016 = vand.u32 %v776, 65535
        %v1017 = vshra.s32 %v776, 16
        %v1018 = vcvt.s32.f32 %v1016
        %v1019 = vcvt.s32.f32 %v1017
        %1020 = vmin.xlane.f32.xlu0 %v1019
        %v1021 = vpop.xlane.xlu0 %1020
        %vm1022 = vcmp.eq.f32.partialorder %v1019, %v1021
        %v1023 = vsel %vm1022, %v1018, inf
        %1024 = vmin.xlane.f32.xlu0 %v1023
        %v1025 = vpop.xlane.xlu0 %1024
        %v1026 = vcvt.f32.s32 %v1025
        %v1027 = vcvt.f32.s32 %v1021
        %v1028 = vshll.u32 %v1027, 16
        %v1029 = vadd.s32 %v1028, %v1026
        %v1030 = vand.u32 %v777, 65535
        %v1031 = vshra.s32 %v777, 16
        %v1032 = vcvt.s32.f32 %v1030
        %v1033 = vcvt.s32.f32 %v1031
        %1034 = vmin.xlane.f32.xlu0 %v1033
        %v1035 = vpop.xlane.xlu0 %1034
        %vm1036 = vcmp.eq.f32.partialorder %v1033, %v1035
        %v1037 = vsel %vm1036, %v1032, inf
        %1038 = vmin.xlane.f32.xlu0 %v1037
        %v1039 = vpop.xlane.xlu0 %1038
        %v1040 = vcvt.f32.s32 %v1039
        %v1041 = vcvt.f32.s32 %v1035
        %v1042 = vshll.u32 %v1041, 16
        %v1043 = vadd.s32 %v1042, %v1040
        %v1044 = vand.u32 %v778, 65535
        %v1045 = vshra.s32 %v778, 16
        %v1046 = vcvt.s32.f32 %v1044
        %v1047 = vcvt.s32.f32 %v1045
        %1048 = vmin.xlane.f32.xlu0 %v1047
        %v1049 = vpop.xlane.xlu0 %1048
        %vm1050 = vcmp.eq.f32.partialorder %v1047, %v1049
        %v1051 = vsel %vm1050, %v1046, inf
        %1052 = vmin.xlane.f32.xlu0 %v1051
        %v1053 = vpop.xlane.xlu0 %1052
        %v1054 = vcvt.f32.s32 %v1053
        %v1055 = vcvt.f32.s32 %v1049
        %v1056 = vshll.u32 %v1055, 16
        %v1057 = vadd.s32 %v1056, %v1054
        %v1058 = vand.u32 %v779, 65535
        %v1059 = vshra.s32 %v779, 16
        %v1060 = vcvt.s32.f32 %v1058
        %v1061 = vcvt.s32.f32 %v1059
        %1062 = vmin.xlane.f32.xlu0 %v1061
        %v1063 = vpop.xlane.xlu0 %1062
        %vm1064 = vcmp.eq.f32.partialorder %v1061, %v1063
        %v1065 = vsel %vm1064, %v1060, inf
        %1066 = vmin.xlane.f32.xlu0 %v1065
        %v1067 = vpop.xlane.xlu0 %1066
        %v1068 = vcvt.f32.s32 %v1067
        %v1069 = vcvt.f32.s32 %v1063
        %v1070 = vshll.u32 %v1069, 16
        %v1071 = vadd.s32 %v1070, %v1068
        %v1072 = vand.u32 %v780, 65535
        %v1073 = vshra.s32 %v780, 16
        %v1074 = vcvt.s32.f32 %v1072
        %v1075 = vcvt.s32.f32 %v1073
        %1076 = vmin.xlane.f32.xlu0 %v1075
        %v1077 = vpop.xlane.xlu0 %1076
        %vm1078 = vcmp.eq.f32.partialorder %v1075, %v1077
        %v1079 = vsel %vm1078, %v1074, inf
        %1080 = vmin.xlane.f32.xlu0 %v1079
        %v1081 = vpop.xlane.xlu0 %1080
        %v1082 = vcvt.f32.s32 %v1081
        %v1083 = vcvt.f32.s32 %v1077
        %v1084 = vshll.u32 %v1083, 16
        %v1085 = vadd.s32 %v1084, %v1082
        %v1086 = vand.u32 %v781, 65535
        %v1087 = vshra.s32 %v781, 16
        %v1088 = vcvt.s32.f32 %v1086
        %v1089 = vcvt.s32.f32 %v1087
        %1090 = vmin.xlane.f32.xlu0 %v1089
        %v1091 = vpop.xlane.xlu0 %1090
        %vm1092 = vcmp.eq.f32.partialorder %v1089, %v1091
        %v1093 = vsel %vm1092, %v1088, inf
        %1094 = vmin.xlane.f32.xlu0 %v1093
        %v1095 = vpop.xlane.xlu0 %1094
        %v1096 = vcvt.f32.s32 %v1095
        %v1097 = vcvt.f32.s32 %v1091
        %v1098 = vshll.u32 %v1097, 16
        %v1099 = vadd.s32 %v1098, %v1096
        %v1100 = vand.u32 %v782, 65535
        %v1101 = vshra.s32 %v782, 16
        %v1102 = vcvt.s32.f32 %v1100
        %v1103 = vcvt.s32.f32 %v1101
        %1104 = vmin.xlane.f32.xlu0 %v1103
        %v1105 = vpop.xlane.xlu0 %1104
        %vm1106 = vcmp.eq.f32.partialorder %v1103, %v1105
        %v1107 = vsel %vm1106, %v1102, inf
        %1108 = vmin.xlane.f32.xlu0 %v1107
        %v1109 = vpop.xlane.xlu0 %1108
        %v1110 = vcvt.f32.s32 %v1109
        %v1111 = vcvt.f32.s32 %v1105
        %v1112 = vshll.u32 %v1111, 16
        %v1113 = vadd.s32 %v1112, %v1110
        %v1114 = vand.u32 %v783, 65535
        %v1115 = vshra.s32 %v783, 16
        %v1116 = vcvt.s32.f32 %v1114
        %v1117 = vcvt.s32.f32 %v1115
        %1118 = vmin.xlane.f32.xlu0 %v1117
        %v1119 = vpop.xlane.xlu0 %1118
        %vm1120 = vcmp.eq.f32.partialorder %v1117, %v1119
        %v1121 = vsel %vm1120, %v1116, inf
        %1122 = vmin.xlane.f32.xlu0 %v1121
        %v1123 = vpop.xlane.xlu0 %1122
        %v1124 = vcvt.f32.s32 %v1123
        %v1125 = vcvt.f32.s32 %v1119
        %v1126 = vshll.u32 %v1125, 16
        %v1127 = vadd.s32 %v1126, %v1124
        %v1128 = vand.u32 %v784, 65535
        %v1129 = vshra.s32 %v784, 16
        %v1130 = vcvt.s32.f32 %v1128
        %v1131 = vcvt.s32.f32 %v1129
        %1132 = vmin.xlane.f32.xlu0 %v1131
        %v1133 = vpop.xlane.xlu0 %1132
        %vm1134 = vcmp.eq.f32.partialorder %v1131, %v1133
        %v1135 = vsel %vm1134, %v1130, inf
        %1136 = vmin.xlane.f32.xlu0 %v1135
        %v1137 = vpop.xlane.xlu0 %1136
        %v1138 = vcvt.f32.s32 %v1137
        %v1139 = vcvt.f32.s32 %v1133
        %v1140 = vshll.u32 %v1139, 16
        %v1141 = vadd.s32 %v1140, %v1138
        %v1142 = vand.u32 %v785, 65535
        %v1143 = vshra.s32 %v785, 16
        %v1144 = vcvt.s32.f32 %v1142
        %v1145 = vcvt.s32.f32 %v1143
        %1146 = vmin.xlane.f32.xlu0 %v1145
        %v1147 = vpop.xlane.xlu0 %1146
        %vm1148 = vcmp.eq.f32.partialorder %v1145, %v1147
        %v1149 = vsel %vm1148, %v1144, inf
        %1150 = vmin.xlane.f32.xlu0 %v1149
        %v1151 = vpop.xlane.xlu0 %1150
        %v1152 = vcvt.f32.s32 %v1151
        %v1153 = vcvt.f32.s32 %v1147
        %v1154 = vshll.u32 %v1153, 16
        %v1155 = vadd.s32 %v1154, %v1152
        %v1156 = vand.u32 %v786, 65535
        %v1157 = vshra.s32 %v786, 16
        %v1158 = vcvt.s32.f32 %v1156
        %v1159 = vcvt.s32.f32 %v1157
        %1160 = vmin.xlane.f32.xlu0 %v1159
        %v1161 = vpop.xlane.xlu0 %1160
        %vm1162 = vcmp.eq.f32.partialorder %v1159, %v1161
        %v1163 = vsel %vm1162, %v1158, inf
        %1164 = vmin.xlane.f32.xlu0 %v1163
        %v1165 = vpop.xlane.xlu0 %1164
        %v1166 = vcvt.f32.s32 %v1165
        %v1167 = vcvt.f32.s32 %v1161
        %v1168 = vshll.u32 %v1167, 16
        %v1169 = vadd.s32 %v1168, %v1166
        %v1170 = vand.u32 %v787, 65535
        %v1171 = vshra.s32 %v787, 16
        %v1172 = vcvt.s32.f32 %v1170
        %v1173 = vcvt.s32.f32 %v1171
        %1174 = vmin.xlane.f32.xlu0 %v1173
        %v1175 = vpop.xlane.xlu0 %1174
        %vm1176 = vcmp.eq.f32.partialorder %v1173, %v1175
        %v1177 = vsel %vm1176, %v1172, inf
        %1178 = vmin.xlane.f32.xlu0 %v1177
        %v1179 = vpop.xlane.xlu0 %1178
        %v1180 = vcvt.f32.s32 %v1179
        %v1181 = vcvt.f32.s32 %v1175
        %v1182 = vshll.u32 %v1181, 16
        %v1183 = vadd.s32 %v1182, %v1180
        %v1184 = vand.u32 %v788, 65535
        %v1185 = vshra.s32 %v788, 16
        %v1186 = vcvt.s32.f32 %v1184
        %v1187 = vcvt.s32.f32 %v1185
        %1188 = vmin.xlane.f32.xlu0 %v1187
        %v1189 = vpop.xlane.xlu0 %1188
        %vm1190 = vcmp.eq.f32.partialorder %v1187, %v1189
        %v1191 = vsel %vm1190, %v1186, inf
        %1192 = vmin.xlane.f32.xlu0 %v1191
        %v1193 = vpop.xlane.xlu0 %1192
        %v1194 = vcvt.f32.s32 %v1193
        %v1195 = vcvt.f32.s32 %v1189
        %v1196 = vshll.u32 %v1195, 16
        %v1197 = vadd.s32 %v1196, %v1194
        %v1198 = vand.u32 %v789, 65535
        %v1199 = vshra.s32 %v789, 16
        %v1200 = vcvt.s32.f32 %v1198
        %v1201 = vcvt.s32.f32 %v1199
        %1202 = vmin.xlane.f32.xlu0 %v1201
        %v1203 = vpop.xlane.xlu0 %1202
        %vm1204 = vcmp.eq.f32.partialorder %v1201, %v1203
        %v1205 = vsel %vm1204, %v1200, inf
        %1206 = vmin.xlane.f32.xlu0 %v1205
        %v1207 = vpop.xlane.xlu0 %1206
        %v1208 = vcvt.f32.s32 %v1207
        %v1209 = vcvt.f32.s32 %v1203
        %v1210 = vshll.u32 %v1209, 16
        %v1211 = vadd.s32 %v1210, %v1208
        %v1212 = vand.u32 %v790, 65535
        %v1213 = vshra.s32 %v790, 16
        %v1214 = vcvt.s32.f32 %v1212
        %v1215 = vcvt.s32.f32 %v1213
        %1216 = vmin.xlane.f32.xlu0 %v1215
        %v1217 = vpop.xlane.xlu0 %1216
        %vm1218 = vcmp.eq.f32.partialorder %v1215, %v1217
        %v1219 = vsel %vm1218, %v1214, inf
        %1220 = vmin.xlane.f32.xlu0 %v1219
        %v1221 = vpop.xlane.xlu0 %1220
        %v1222 = vcvt.f32.s32 %v1221
        %v1223 = vcvt.f32.s32 %v1217
        %v1224 = vshll.u32 %v1223, 16
        %v1225 = vadd.s32 %v1224, %v1222
        %v1226 = vand.u32 %v791, 65535
        %v1227 = vshra.s32 %v791, 16
        %v1228 = vcvt.s32.f32 %v1226
        %v1229 = vcvt.s32.f32 %v1227
        %1230 = vmin.xlane.f32.xlu0 %v1229
        %v1231 = vpop.xlane.xlu0 %1230
        %vm1232 = vcmp.eq.f32.partialorder %v1229, %v1231
        %v1233 = vsel %vm1232, %v1228, inf
        %1234 = vmin.xlane.f32.xlu0 %v1233
        %v1235 = vpop.xlane.xlu0 %1234
        %v1236 = vcvt.f32.s32 %v1235
        %v1237 = vcvt.f32.s32 %v1231
        %v1238 = vshll.u32 %v1237, 16
        %v1239 = vadd.s32 %v1238, %v1236
        %vm1240 = vcmp.eq.s32.totalorder %v663, %v805
        %vm1241 = vcmp.eq.s32.totalorder %v663, %v819
        %vm1242 = vcmp.eq.s32.totalorder %v663, %v833
        %vm1243 = vcmp.eq.s32.totalorder %v663, %v847
        %vm1244 = vcmp.eq.s32.totalorder %v663, %v861
        %vm1245 = vcmp.eq.s32.totalorder %v663, %v875
        %vm1246 = vcmp.eq.s32.totalorder %v663, %v889
        %vm1247 = vcmp.eq.s32.totalorder %v663, %v903
        %vm1248 = vcmp.eq.s32.totalorder %v663, %v917
        %vm1249 = vcmp.eq.s32.totalorder %v663, %v931
        %vm1250 = vcmp.eq.s32.totalorder %v663, %v945
        %vm1251 = vcmp.eq.s32.totalorder %v663, %v959
        %vm1252 = vcmp.eq.s32.totalorder %v663, %v973
        %vm1253 = vcmp.eq.s32.totalorder %v663, %v987
        %vm1254 = vcmp.eq.s32.totalorder %v663, %v1001
        %vm1255 = vcmp.eq.s32.totalorder %v663, %v1015
        %vm1256 = vcmp.eq.s32.totalorder %v663, %v1029
        %vm1257 = vcmp.eq.s32.totalorder %v663, %v1043
        %vm1258 = vcmp.eq.s32.totalorder %v663, %v1057
        %vm1259 = vcmp.eq.s32.totalorder %v663, %v1071
        %vm1260 = vcmp.eq.s32.totalorder %v663, %v1085
        %vm1261 = vcmp.eq.s32.totalorder %v663, %v1099
        %vm1262 = vcmp.eq.s32.totalorder %v663, %v1113
        %vm1263 = vcmp.eq.s32.totalorder %v663, %v1127
        %vm1264 = vcmp.eq.s32.totalorder %v663, %v1141
        %vm1265 = vcmp.eq.s32.totalorder %v663, %v1155
        %vm1266 = vcmp.eq.s32.totalorder %v663, %v1169
        %vm1267 = vcmp.eq.s32.totalorder %v663, %v1183
        %vm1268 = vcmp.eq.s32.totalorder %v663, %v1197
        %vm1269 = vcmp.eq.s32.totalorder %v663, %v1211
        %vm1270 = vcmp.eq.s32.totalorder %v663, %v1225
        %vm1271 = vcmp.eq.s32.totalorder %v663, %v1239
        %v1272 = vsel %vm1240, 1, 0
        %v1273 = vsel %vm1241, 1, 0
        %v1274 = vsel %vm1242, 1, 0
        %v1275 = vsel %vm1243, 1, 0
        %v1276 = vsel %vm1244, 1, 0
        %v1277 = vsel %vm1245, 1, 0
        %v1278 = vsel %vm1246, 1, 0
        %v1279 = vsel %vm1247, 1, 0
        %v1280 = vsel %vm1248, 1, 0
        %v1281 = vsel %vm1249, 1, 0
        %v1282 = vsel %vm1250, 1, 0
        %v1283 = vsel %vm1251, 1, 0
        %v1284 = vsel %vm1252, 1, 0
        %v1285 = vsel %vm1253, 1, 0
        %v1286 = vsel %vm1254, 1, 0
        %v1287 = vsel %vm1255, 1, 0
        %v1288 = vsel %vm1256, 1, 0
        %v1289 = vsel %vm1257, 1, 0
        %v1290 = vsel %vm1258, 1, 0
        %v1291 = vsel %vm1259, 1, 0
        %v1292 = vsel %vm1260, 1, 0
        %v1293 = vsel %vm1261, 1, 0
        %v1294 = vsel %vm1262, 1, 0
        %v1295 = vsel %vm1263, 1, 0
        %v1296 = vsel %vm1264, 1, 0
        %v1297 = vsel %vm1265, 1, 0
        %v1298 = vsel %vm1266, 1, 0
        %v1299 = vsel %vm1267, 1, 0
        %v1300 = vsel %vm1268, 1, 0
        %v1301 = vsel %vm1269, 1, 0
        %v1302 = vsel %vm1270, 1, 0
        %v1303 = vsel %vm1271, 1, 0
        %v1304 = vcvt.s32.f32 %v1272
        %v1305 = vcvt.s32.f32 %v1273
        %v1306 = vcvt.s32.f32 %v1274
        %v1307 = vcvt.s32.f32 %v1275
        %v1308 = vcvt.s32.f32 %v1276
        %v1309 = vcvt.s32.f32 %v1277
        %v1310 = vcvt.s32.f32 %v1278
        %v1311 = vcvt.s32.f32 %v1279
        %v1312 = vcvt.s32.f32 %v1280
        %v1313 = vcvt.s32.f32 %v1281
        %v1314 = vcvt.s32.f32 %v1282
        %v1315 = vcvt.s32.f32 %v1283
        %v1316 = vcvt.s32.f32 %v1284
        %v1317 = vcvt.s32.f32 %v1285
        %v1318 = vcvt.s32.f32 %v1286
        %v1319 = vcvt.s32.f32 %v1287
        %v1320 = vcvt.s32.f32 %v1288
        %v1321 = vcvt.s32.f32 %v1289
        %v1322 = vcvt.s32.f32 %v1290
        %v1323 = vcvt.s32.f32 %v1291
        %v1324 = vcvt.s32.f32 %v1292
        %v1325 = vcvt.s32.f32 %v1293
        %v1326 = vcvt.s32.f32 %v1294
        %v1327 = vcvt.s32.f32 %v1295
        %v1328 = vcvt.s32.f32 %v1296
        %v1329 = vcvt.s32.f32 %v1297
        %v1330 = vcvt.s32.f32 %v1298
        %v1331 = vcvt.s32.f32 %v1299
        %v1332 = vcvt.s32.f32 %v1300
        %v1333 = vcvt.s32.f32 %v1301
        %v1334 = vcvt.s32.f32 %v1302
        %v1335 = vcvt.s32.f32 %v1303
        %v1336 = vpack.c.bf16 %v1305, %v1304
        %v1337 = vpack.c.bf16 %v1307, %v1306
        %v1338 = vpack.c.bf16 %v1309, %v1308
        %v1339 = vpack.c.bf16 %v1311, %v1310
        %v1340 = vpack.c.bf16 %v1313, %v1312
        %v1341 = vpack.c.bf16 %v1315, %v1314
        %v1342 = vpack.c.bf16 %v1317, %v1316
        %v1343 = vpack.c.bf16 %v1319, %v1318
        %v1344 = vpack.c.bf16 %v1321, %v1320
        %v1345 = vpack.c.bf16 %v1323, %v1322
        %v1346 = vpack.c.bf16 %v1325, %v1324
        %v1347 = vpack.c.bf16 %v1327, %v1326
        %v1348 = vpack.c.bf16 %v1329, %v1328
        %v1349 = vpack.c.bf16 %v1331, %v1330
        %v1350 = vpack.c.bf16 %v1333, %v1332
        %v1351 = vpack.c.bf16 %v1335, %v1334
        %v1352 = vld [vmem:[%s3] sm:$0xf]
        %v1353 = vld [vmem:[%s3 + $0x4] sm:$0xf]
        %v1354 = vld [vmem:[%s3 + $0x8] sm:$0xf]
        %v1355 = vld [vmem:[%s3 + $0xc] sm:$0xf]
        %v1356 = vld [vmem:[%s3 + $0x10] sm:$0xf]
        %v1357 = vld [vmem:[%s3 + $0x14] sm:$0xf]
        %v1358 = vld [vmem:[%s3 + $0x18] sm:$0xf]
        %v1359 = vld [vmem:[%s3 + $0x1c] sm:$0xf]
        %v1360 = vld [vmem:[%s3 + $0x20] sm:$0xf]
        %v1361 = vld [vmem:[%s3 + $0x24] sm:$0xf]
        %v1362 = vld [vmem:[%s3 + $0x28] sm:$0xf]
        %v1363 = vld [vmem:[%s3 + $0x2c] sm:$0xf]
        %v1364 = vld [vmem:[%s3 + $0x30] sm:$0xf]
        %v1365 = vld [vmem:[%s3 + $0x34] sm:$0xf]
        %v1366 = vld [vmem:[%s3 + $0x38] sm:$0xf]
        %v1367 = vld [vmem:[%s3 + $0x3c] sm:$0xf]
        %v1368 = vld [vmem:[%s4] sm:$0xf]
        %v1369 = vld [vmem:[%s4 + $0x4] sm:$0xf]
        %v1370 = vld [vmem:[%s4 + $0x8] sm:$0xf]
        %v1371 = vld [vmem:[%s4 + $0xc] sm:$0xf]
        %v1372 = vld [vmem:[%s4 + $0x10] sm:$0xf]
        %v1373 = vld [vmem:[%s4 + $0x14] sm:$0xf]
        %v1374 = vld [vmem:[%s4 + $0x18] sm:$0xf]
        %v1375 = vld [vmem:[%s4 + $0x1c] sm:$0xf]
        %v1376 = vld [vmem:[%s4 + $0x20] sm:$0xf]
        %v1377 = vld [vmem:[%s4 + $0x24] sm:$0xf]
        %v1378 = vld [vmem:[%s4 + $0x28] sm:$0xf]
        %v1379 = vld [vmem:[%s4 + $0x2c] sm:$0xf]
        %v1380 = vld [vmem:[%s4 + $0x30] sm:$0xf]
        %v1381 = vld [vmem:[%s4 + $0x34] sm:$0xf]
        %v1382 = vld [vmem:[%s4 + $0x38] sm:$0xf]
        %v1383 = vld [vmem:[%s4 + $0x3c] sm:$0xf]
        %v1400 = vunpack.c.l.b16 %v1368
        %v1401 = vunpack.c.l.b16 %v1369
        %v1402 = vunpack.c.l.b16 %v1370
        %v1403 = vunpack.c.l.b16 %v1371
        %v1404 = vunpack.c.l.b16 %v1372
        %v1405 = vunpack.c.l.b16 %v1373
        %v1406 = vunpack.c.l.b16 %v1374
        %v1407 = vunpack.c.l.b16 %v1375
        %v1408 = vunpack.c.l.b16 %v1376
        %v1409 = vunpack.c.l.b16 %v1377
        %v1410 = vunpack.c.l.b16 %v1378
        %v1411 = vunpack.c.l.b16 %v1379
        %v1412 = vunpack.c.l.b16 %v1380
        %v1413 = vunpack.c.l.b16 %v1381
        %v1414 = vunpack.c.l.b16 %v1382
        %v1415 = vunpack.c.l.b16 %v1383
        %v1416 = vpack.c.b16 %v1401, %v1400
        %v1417 = vpack.c.b16 %v1403, %v1402
        %v1418 = vpack.c.b16 %v1405, %v1404
        %v1419 = vpack.c.b16 %v1407, %v1406
        %v1420 = vpack.c.b16 %v1409, %v1408
        %v1421 = vpack.c.b16 %v1411, %v1410
        %v1422 = vpack.c.b16 %v1413, %v1412
        %v1423 = vpack.c.b16 %v1415, %v1414
        %1432 = vmatprep.subr.bf16.mxu0 0
        %1433 = vmatpush1.bf16.msra.mxu0 %v1423
        %1434 = vmatprep.subr.bf16.mxu0 0
        %1435 = vmatpush1.bf16.msra.mxu0 %v1422
        %1436 = vmatprep.subr.bf16.mxu0 0
        %1437 = vmatpush1.bf16.msra.mxu0 %v1421
        %1438 = vmatprep.subr.bf16.mxu0 0
        %1439 = vmatpush1.bf16.msra.mxu0 %v1420
        %1440 = vmatprep.subr.bf16.mxu0 0
        %1441 = vmatpush1.bf16.msra.mxu0 %v1419
        %1442 = vmatprep.subr.bf16.mxu0 0
        %1443 = vmatpush1.bf16.msra.mxu0 %v1418
        %1444 = vmatprep.subr.bf16.mxu0 0
        %1445 = vmatpush1.bf16.msra.mxu0 %v1417
        %1446 = vmatprep.subr.bf16.mxu0 0
        %1447 = vmatpush1.bf16.msra.mxu0 %v1416
        %1448 = vmatprep.subr.bf16.mxu0 0
        %1449 = vmatpush2.bf16.msra.mxu0 0
        %1450 = vmatprep.subr.bf16.mxu0 0
        %1451 = vmatpush2.bf16.msra.mxu0 0
        %1452 = vmatprep.subr.bf16.mxu0 0
        %1453 = vmatpush2.bf16.msra.mxu0 0
        %1454 = vmatprep.subr.bf16.mxu0 0
        %1455 = vmatpush2.bf16.msra.mxu0 0
        %1456 = vmatprep.subr.bf16.mxu0 0
        %1457 = vmatpush2.bf16.msra.mxu0 0
        %1458 = vmatprep.subr.bf16.mxu0 0
        %1459 = vmatpush2.bf16.msra.mxu0 0
        %1460 = vmatprep.subr.bf16.mxu0 0
        %1461 = vmatpush2.bf16.msra.mxu0 0
        %1462 = vmatprep.subr.bf16.mxu0 0
        %1463 = vmatpush2.bf16.msra.mxu0 0
        %1464 = vmatprep.mubr.bf16.mxu0 0
        %1465 = vmatmul.mubr.bf16.gmra.mxu0 %v1336
        %v1466 = vpop.f32.mrf.mxu0
        %v1467 = vadd.f32 0.0, %v1466
        %v1468 = vpop.f32.mrf.mxu0
        %v1469 = vpop.f32.mrf.mxu0
        %v1470 = vadd.f32 0.0, %v1469
        %v1471 = vpop.f32.mrf.mxu0
        %1472 = vmatprep.mubr.bf16.mxu0 0
        %1473 = vmatmul.mubr.bf16.gmra.mxu0 %v1337
        %v1474 = vpop.f32.mrf.mxu0
        %v1475 = vadd.f32 0.0, %v1474
        %v1476 = vpop.f32.mrf.mxu0
        %v1477 = vpop.f32.mrf.mxu0
        %v1478 = vadd.f32 0.0, %v1477
        %v1479 = vpop.f32.mrf.mxu0
        %1480 = vmatprep.mubr.bf16.mxu0 0
        %1481 = vmatmul.mubr.bf16.gmra.mxu0 %v1338
        %v1482 = vpop.f32.mrf.mxu0
        %v1483 = vadd.f32 0.0, %v1482
        %v1484 = vpop.f32.mrf.mxu0
        %v1485 = vpop.f32.mrf.mxu0
        %v1486 = vadd.f32 0.0, %v1485
        %v1487 = vpop.f32.mrf.mxu0
        %1488 = vmatprep.mubr.bf16.mxu0 0
        %1489 = vmatmul.mubr.bf16.gmra.mxu0 %v1339
        %v1490 = vpop.f32.mrf.mxu0
        %v1491 = vadd.f32 0.0, %v1490
        %v1492 = vpop.f32.mrf.mxu0
        %v1493 = vpop.f32.mrf.mxu0
        %v1494 = vadd.f32 0.0, %v1493
        %v1495 = vpop.f32.mrf.mxu0
        %1496 = vmatprep.mubr.bf16.mxu0 0
        %1497 = vmatmul.mubr.bf16.gmra.mxu0 %v1340
        %v1498 = vpop.f32.mrf.mxu0
        %v1499 = vadd.f32 0.0, %v1498
        %v1500 = vpop.f32.mrf.mxu0
        %v1501 = vpop.f32.mrf.mxu0
        %v1502 = vadd.f32 0.0, %v1501
        %v1503 = vpop.f32.mrf.mxu0
        %1504 = vmatprep.mubr.bf16.mxu0 0
        %1505 = vmatmul.mubr.bf16.gmra.mxu0 %v1341
        %v1506 = vpop.f32.mrf.mxu0
        %v1507 = vadd.f32 0.0, %v1506
        %v1508 = vpop.f32.mrf.mxu0
        %v1509 = vpop.f32.mrf.mxu0
        %v1510 = vadd.f32 0.0, %v1509
        %v1511 = vpop.f32.mrf.mxu0
        %1512 = vmatprep.mubr.bf16.mxu0 0
        %1513 = vmatmul.mubr.bf16.gmra.mxu0 %v1342
        %v1514 = vpop.f32.mrf.mxu0
        %v1515 = vadd.f32 0.0, %v1514
        %v1516 = vpop.f32.mrf.mxu0
        %v1517 = vpop.f32.mrf.mxu0
        %v1518 = vadd.f32 0.0, %v1517
        %v1519 = vpop.f32.mrf.mxu0
        %1520 = vmatprep.mubr.bf16.mxu0 0
        %1521 = vmatmul.mubr.bf16.gmra.mxu0 %v1343
        %v1522 = vpop.f32.mrf.mxu0
        %v1523 = vadd.f32 0.0, %v1522
        %v1524 = vpop.f32.mrf.mxu0
        %v1525 = vpop.f32.mrf.mxu0
        %v1526 = vadd.f32 0.0, %v1525
        %v1527 = vpop.f32.mrf.mxu0
        %1528 = vmatprep.mubr.bf16.mxu0 0
        %1529 = vmatmul.mubr.bf16.gmra.mxu0 %v1344
        %v1530 = vpop.f32.mrf.mxu0
        %v1531 = vadd.f32 0.0, %v1530
        %v1532 = vpop.f32.mrf.mxu0
        %v1533 = vpop.f32.mrf.mxu0
        %v1534 = vadd.f32 0.0, %v1533
        %v1535 = vpop.f32.mrf.mxu0
        %1536 = vmatprep.mubr.bf16.mxu0 0
        %1537 = vmatmul.mubr.bf16.gmra.mxu0 %v1345
        %v1538 = vpop.f32.mrf.mxu0
        %v1539 = vadd.f32 0.0, %v1538
        %v1540 = vpop.f32.mrf.mxu0
        %v1541 = vpop.f32.mrf.mxu0
        %v1542 = vadd.f32 0.0, %v1541
        %v1543 = vpop.f32.mrf.mxu0
        %1544 = vmatprep.mubr.bf16.mxu0 0
        %1545 = vmatmul.mubr.bf16.gmra.mxu0 %v1346
        %v1546 = vpop.f32.mrf.mxu0
        %v1547 = vadd.f32 0.0, %v1546
        %v1548 = vpop.f32.mrf.mxu0
        %v1549 = vpop.f32.mrf.mxu0
        %v1550 = vadd.f32 0.0, %v1549
        %v1551 = vpop.f32.mrf.mxu0
        %1552 = vmatprep.mubr.bf16.mxu0 0
        %1553 = vmatmul.mubr.bf16.gmra.mxu0 %v1347
        %v1554 = vpop.f32.mrf.mxu0
        %v1555 = vadd.f32 0.0, %v1554
        %v1556 = vpop.f32.mrf.mxu0
        %v1557 = vpop.f32.mrf.mxu0
        %v1558 = vadd.f32 0.0, %v1557
        %v1559 = vpop.f32.mrf.mxu0
        %1560 = vmatprep.mubr.bf16.mxu0 0
        %1561 = vmatmul.mubr.bf16.gmra.mxu0 %v1348
        %v1562 = vpop.f32.mrf.mxu0
        %v1563 = vadd.f32 0.0, %v1562
        %v1564 = vpop.f32.mrf.mxu0
        %v1565 = vpop.f32.mrf.mxu0
        %v1566 = vadd.f32 0.0, %v1565
        %v1567 = vpop.f32.mrf.mxu0
        %1568 = vmatprep.mubr.bf16.mxu0 0
        %1569 = vmatmul.mubr.bf16.gmra.mxu0 %v1349
        %v1570 = vpop.f32.mrf.mxu0
        %v1571 = vadd.f32 0.0, %v1570
        %v1572 = vpop.f32.mrf.mxu0
        %v1573 = vpop.f32.mrf.mxu0
        %v1574 = vadd.f32 0.0, %v1573
        %v1575 = vpop.f32.mrf.mxu0
        %1576 = vmatprep.mubr.bf16.mxu0 0
        %1577 = vmatmul.mubr.bf16.gmra.mxu0 %v1350
        %v1578 = vpop.f32.mrf.mxu0
        %v1579 = vadd.f32 0.0, %v1578
        %v1580 = vpop.f32.mrf.mxu0
        %v1581 = vpop.f32.mrf.mxu0
        %v1582 = vadd.f32 0.0, %v1581
        %v1583 = vpop.f32.mrf.mxu0
        %1584 = vmatprep.mubr.bf16.mxu0 0
        %1585 = vmatmul.mubr.bf16.gmra.mxu0 %v1351
        %v1586 = vpop.f32.mrf.mxu0
        %v1587 = vadd.f32 0.0, %v1586
        %v1588 = vpop.f32.mrf.mxu0
        %v1589 = vpop.f32.mrf.mxu0
        %v1590 = vadd.f32 0.0, %v1589
        %v1591 = vpop.f32.mrf.mxu0
        %1592 = vdwg.mxu0
        %v1609 = vunpack.c.l.b16 %v1352
        %v1610 = vunpack.c.l.b16 %v1353
        %v1611 = vunpack.c.l.b16 %v1354
        %v1612 = vunpack.c.l.b16 %v1355
        %v1613 = vunpack.c.l.b16 %v1356
        %v1614 = vunpack.c.l.b16 %v1357
        %v1615 = vunpack.c.l.b16 %v1358
        %v1616 = vunpack.c.l.b16 %v1359
        %v1617 = vunpack.c.l.b16 %v1360
        %v1618 = vunpack.c.l.b16 %v1361
        %v1619 = vunpack.c.l.b16 %v1362
        %v1620 = vunpack.c.l.b16 %v1363
        %v1621 = vunpack.c.l.b16 %v1364
        %v1622 = vunpack.c.l.b16 %v1365
        %v1623 = vunpack.c.l.b16 %v1366
        %v1624 = vunpack.c.l.b16 %v1367
        %v1625 = vpack.c.b16 %v1610, %v1609
        %v1626 = vpack.c.b16 %v1612, %v1611
        %v1627 = vpack.c.b16 %v1614, %v1613
        %v1628 = vpack.c.b16 %v1616, %v1615
        %v1629 = vpack.c.b16 %v1618, %v1617
        %v1630 = vpack.c.b16 %v1620, %v1619
        %v1631 = vpack.c.b16 %v1622, %v1621
        %v1632 = vpack.c.b16 %v1624, %v1623
        %1641 = vmatprep.subr.bf16.mxu0 0
        %1642 = vmatpush1.bf16.msra.mxu0 %v1632
        %1643 = vmatprep.subr.bf16.mxu0 0
        %1644 = vmatpush1.bf16.msra.mxu0 %v1631
        %1645 = vmatprep.subr.bf16.mxu0 0
        %1646 = vmatpush1.bf16.msra.mxu0 %v1630
        %1647 = vmatprep.subr.bf16.mxu0 0
        %1648 = vmatpush1.bf16.msra.mxu0 %v1629
        %1649 = vmatprep.subr.bf16.mxu0 0
        %1650 = vmatpush1.bf16.msra.mxu0 %v1628
        %1651 = vmatprep.subr.bf16.mxu0 0
        %1652 = vmatpush1.bf16.msra.mxu0 %v1627
        %1653 = vmatprep.subr.bf16.mxu0 0
        %1654 = vmatpush1.bf16.msra.mxu0 %v1626
        %1655 = vmatprep.subr.bf16.mxu0 0
        %1656 = vmatpush1.bf16.msra.mxu0 %v1625
        %1657 = vmatprep.subr.bf16.mxu0 0
        %1658 = vmatpush2.bf16.msra.mxu0 0
        %1659 = vmatprep.subr.bf16.mxu0 0
        %1660 = vmatpush2.bf16.msra.mxu0 0
        %1661 = vmatprep.subr.bf16.mxu0 0
        %1662 = vmatpush2.bf16.msra.mxu0 0
        %1663 = vmatprep.subr.bf16.mxu0 0
        %1664 = vmatpush2.bf16.msra.mxu0 0
        %1665 = vmatprep.subr.bf16.mxu0 0
        %1666 = vmatpush2.bf16.msra.mxu0 0
        %1667 = vmatprep.subr.bf16.mxu0 0
        %1668 = vmatpush2.bf16.msra.mxu0 0
        %1669 = vmatprep.subr.bf16.mxu0 0
        %1670 = vmatpush2.bf16.msra.mxu0 0
        %1671 = vmatprep.subr.bf16.mxu0 0
        %1672 = vmatpush2.bf16.msra.mxu0 0
        %1673 = vmatprep.mubr.bf16.mxu0 0
        %1674 = vmatmul.mubr.bf16.gmra.mxu0 %v1336
        %v1675 = vpop.f32.mrf.mxu0
        %v1676 = vadd.f32 %v1467, %v1675
        %v1677 = vpop.f32.mrf.mxu0
        %v1678 = vpop.f32.mrf.mxu0
        %v1679 = vadd.f32 %v1470, %v1678
        %v1680 = vpop.f32.mrf.mxu0
        %1681 = vmatprep.mubr.bf16.mxu0 0
        %1682 = vmatmul.mubr.bf16.gmra.mxu0 %v1337
        %v1683 = vpop.f32.mrf.mxu0
        %v1684 = vadd.f32 %v1475, %v1683
        %v1685 = vpop.f32.mrf.mxu0
        %v1686 = vpop.f32.mrf.mxu0
        %v1687 = vadd.f32 %v1478, %v1686
        %v1688 = vpop.f32.mrf.mxu0
        %1689 = vmatprep.mubr.bf16.mxu0 0
        %1690 = vmatmul.mubr.bf16.gmra.mxu0 %v1338
        %v1691 = vpop.f32.mrf.mxu0
        %v1692 = vadd.f32 %v1483, %v1691
        %v1693 = vpop.f32.mrf.mxu0
        %v1694 = vpop.f32.mrf.mxu0
        %v1695 = vadd.f32 %v1486, %v1694
        %v1696 = vpop.f32.mrf.mxu0
        %1697 = vmatprep.mubr.bf16.mxu0 0
        %1698 = vmatmul.mubr.bf16.gmra.mxu0 %v1339
        %v1699 = vpop.f32.mrf.mxu0
        %v1700 = vadd.f32 %v1491, %v1699
        %v1701 = vpop.f32.mrf.mxu0
        %v1702 = vpop.f32.mrf.mxu0
        %v1703 = vadd.f32 %v1494, %v1702
        %v1704 = vpop.f32.mrf.mxu0
        %1705 = vmatprep.mubr.bf16.mxu0 0
        %1706 = vmatmul.mubr.bf16.gmra.mxu0 %v1340
        %v1707 = vpop.f32.mrf.mxu0
        %v1708 = vadd.f32 %v1499, %v1707
        %v1709 = vpop.f32.mrf.mxu0
        %v1710 = vpop.f32.mrf.mxu0
        %v1711 = vadd.f32 %v1502, %v1710
        %v1712 = vpop.f32.mrf.mxu0
        %1713 = vmatprep.mubr.bf16.mxu0 0
        %1714 = vmatmul.mubr.bf16.gmra.mxu0 %v1341
        %v1715 = vpop.f32.mrf.mxu0
        %v1716 = vadd.f32 %v1507, %v1715
        %v1717 = vpop.f32.mrf.mxu0
        %v1718 = vpop.f32.mrf.mxu0
        %v1719 = vadd.f32 %v1510, %v1718
        %v1720 = vpop.f32.mrf.mxu0
        %1721 = vmatprep.mubr.bf16.mxu0 0
        %1722 = vmatmul.mubr.bf16.gmra.mxu0 %v1342
        %v1723 = vpop.f32.mrf.mxu0
        %v1724 = vadd.f32 %v1515, %v1723
        %v1725 = vpop.f32.mrf.mxu0
        %v1726 = vpop.f32.mrf.mxu0
        %v1727 = vadd.f32 %v1518, %v1726
        %v1728 = vpop.f32.mrf.mxu0
        %1729 = vmatprep.mubr.bf16.mxu0 0
        %1730 = vmatmul.mubr.bf16.gmra.mxu0 %v1343
        %v1731 = vpop.f32.mrf.mxu0
        %v1732 = vadd.f32 %v1523, %v1731
        %v1733 = vpop.f32.mrf.mxu0
        %v1734 = vpop.f32.mrf.mxu0
        %v1735 = vadd.f32 %v1526, %v1734
        %v1736 = vpop.f32.mrf.mxu0
        %1737 = vmatprep.mubr.bf16.mxu0 0
        %1738 = vmatmul.mubr.bf16.gmra.mxu0 %v1344
        %v1739 = vpop.f32.mrf.mxu0
        %v1740 = vadd.f32 %v1531, %v1739
        %v1741 = vpop.f32.mrf.mxu0
        %v1742 = vpop.f32.mrf.mxu0
        %v1743 = vadd.f32 %v1534, %v1742
        %v1744 = vpop.f32.mrf.mxu0
        %1745 = vmatprep.mubr.bf16.mxu0 0
        %1746 = vmatmul.mubr.bf16.gmra.mxu0 %v1345
        %v1747 = vpop.f32.mrf.mxu0
        %v1748 = vadd.f32 %v1539, %v1747
        %v1749 = vpop.f32.mrf.mxu0
        %v1750 = vpop.f32.mrf.mxu0
        %v1751 = vadd.f32 %v1542, %v1750
        %v1752 = vpop.f32.mrf.mxu0
        %1753 = vmatprep.mubr.bf16.mxu0 0
        %1754 = vmatmul.mubr.bf16.gmra.mxu0 %v1346
        %v1755 = vpop.f32.mrf.mxu0
        %v1756 = vadd.f32 %v1547, %v1755
        %v1757 = vpop.f32.mrf.mxu0
        %v1758 = vpop.f32.mrf.mxu0
        %v1759 = vadd.f32 %v1550, %v1758
        %v1760 = vpop.f32.mrf.mxu0
        %1761 = vmatprep.mubr.bf16.mxu0 0
        %1762 = vmatmul.mubr.bf16.gmra.mxu0 %v1347
        %v1763 = vpop.f32.mrf.mxu0
        %v1764 = vadd.f32 %v1555, %v1763
        %v1765 = vpop.f32.mrf.mxu0
        %v1766 = vpop.f32.mrf.mxu0
        %v1767 = vadd.f32 %v1558, %v1766
        %v1768 = vpop.f32.mrf.mxu0
        %1769 = vmatprep.mubr.bf16.mxu0 0
        %1770 = vmatmul.mubr.bf16.gmra.mxu0 %v1348
        %v1771 = vpop.f32.mrf.mxu0
        %v1772 = vadd.f32 %v1563, %v1771
        %v1773 = vpop.f32.mrf.mxu0
        %v1774 = vpop.f32.mrf.mxu0
        %v1775 = vadd.f32 %v1566, %v1774
        %v1776 = vpop.f32.mrf.mxu0
        %1777 = vmatprep.mubr.bf16.mxu0 0
        %1778 = vmatmul.mubr.bf16.gmra.mxu0 %v1349
        %v1779 = vpop.f32.mrf.mxu0
        %v1780 = vadd.f32 %v1571, %v1779
        %v1781 = vpop.f32.mrf.mxu0
        %v1782 = vpop.f32.mrf.mxu0
        %v1783 = vadd.f32 %v1574, %v1782
        %v1784 = vpop.f32.mrf.mxu0
        %1785 = vmatprep.mubr.bf16.mxu0 0
        %1786 = vmatmul.mubr.bf16.gmra.mxu0 %v1350
        %v1787 = vpop.f32.mrf.mxu0
        %v1788 = vadd.f32 %v1579, %v1787
        %v1789 = vpop.f32.mrf.mxu0
        %v1790 = vpop.f32.mrf.mxu0
        %v1791 = vadd.f32 %v1582, %v1790
        %v1792 = vpop.f32.mrf.mxu0
        %1793 = vmatprep.mubr.bf16.mxu0 0
        %1794 = vmatmul.mubr.bf16.gmra.mxu0 %v1351
        %v1795 = vpop.f32.mrf.mxu0
        %v1796 = vadd.f32 %v1587, %v1795
        %v1797 = vpop.f32.mrf.mxu0
        %v1798 = vpop.f32.mrf.mxu0
        %v1799 = vadd.f32 %v1590, %v1798
        %v1800 = vpop.f32.mrf.mxu0
        %1801 = vdwg.mxu0
        %v1802 = vld [vmem:[%s5] sm:$0xf]
        %v1803 = vld [vmem:[%s5 + $0x4] sm:$0xf]
        %v1804 = vld [vmem:[%s5 + $0x8] sm:$0xf]
        %v1805 = vld [vmem:[%s5 + $0xc] sm:$0xf]
        %v1806 = vld [vmem:[%s5 + $0x10] sm:$0xf]
        %v1807 = vld [vmem:[%s5 + $0x14] sm:$0xf]
        %v1808 = vld [vmem:[%s5 + $0x18] sm:$0xf]
        %v1809 = vld [vmem:[%s5 + $0x1c] sm:$0xf]
        %v1810 = vld [vmem:[%s5 + $0x20] sm:$0xf]
        %v1811 = vld [vmem:[%s5 + $0x24] sm:$0xf]
        %v1812 = vld [vmem:[%s5 + $0x28] sm:$0xf]
        %v1813 = vld [vmem:[%s5 + $0x2c] sm:$0xf]
        %v1814 = vld [vmem:[%s5 + $0x30] sm:$0xf]
        %v1815 = vld [vmem:[%s5 + $0x34] sm:$0xf]
        %v1816 = vld [vmem:[%s5 + $0x38] sm:$0xf]
        %v1817 = vld [vmem:[%s5 + $0x3c] sm:$0xf]
        %v1834 = vunpack.c.l.b16 %v1802
        %v1835 = vunpack.c.l.b16 %v1803
        %v1836 = vunpack.c.l.b16 %v1804
        %v1837 = vunpack.c.l.b16 %v1805
        %v1838 = vunpack.c.l.b16 %v1806
        %v1839 = vunpack.c.l.b16 %v1807
        %v1840 = vunpack.c.l.b16 %v1808
        %v1841 = vunpack.c.l.b16 %v1809
        %v1842 = vunpack.c.l.b16 %v1810
        %v1843 = vunpack.c.l.b16 %v1811
        %v1844 = vunpack.c.l.b16 %v1812
        %v1845 = vunpack.c.l.b16 %v1813
        %v1846 = vunpack.c.l.b16 %v1814
        %v1847 = vunpack.c.l.b16 %v1815
        %v1848 = vunpack.c.l.b16 %v1816
        %v1849 = vunpack.c.l.b16 %v1817
        %v1850 = vpack.c.b16 %v1835, %v1834
        %v1851 = vpack.c.b16 %v1837, %v1836
        %v1852 = vpack.c.b16 %v1839, %v1838
        %v1853 = vpack.c.b16 %v1841, %v1840
        %v1854 = vpack.c.b16 %v1843, %v1842
        %v1855 = vpack.c.b16 %v1845, %v1844
        %v1856 = vpack.c.b16 %v1847, %v1846
        %v1857 = vpack.c.b16 %v1849, %v1848
        %1866 = vmatprep.subr.bf16.mxu0 0
        %1867 = vmatpush1.bf16.msra.mxu0 %v1857
        %1868 = vmatprep.subr.bf16.mxu0 0
        %1869 = vmatpush1.bf16.msra.mxu0 %v1856
        %1870 = vmatprep.subr.bf16.mxu0 0
        %1871 = vmatpush1.bf16.msra.mxu0 %v1855
        %1872 = vmatprep.subr.bf16.mxu0 0
        %1873 = vmatpush1.bf16.msra.mxu0 %v1854
        %1874 = vmatprep.subr.bf16.mxu0 0
        %1875 = vmatpush1.bf16.msra.mxu0 %v1853
        %1876 = vmatprep.subr.bf16.mxu0 0
        %1877 = vmatpush1.bf16.msra.mxu0 %v1852
        %1878 = vmatprep.subr.bf16.mxu0 0
        %1879 = vmatpush1.bf16.msra.mxu0 %v1851
        %1880 = vmatprep.subr.bf16.mxu0 0
        %1881 = vmatpush1.bf16.msra.mxu0 %v1850
        %1882 = vmatprep.subr.bf16.mxu0 0
        %1883 = vmatpush2.bf16.msra.mxu0 0
        %1884 = vmatprep.subr.bf16.mxu0 0
        %1885 = vmatpush2.bf16.msra.mxu0 0
        %1886 = vmatprep.subr.bf16.mxu0 0
        %1887 = vmatpush2.bf16.msra.mxu0 0
        %1888 = vmatprep.subr.bf16.mxu0 0
        %1889 = vmatpush2.bf16.msra.mxu0 0
        %1890 = vmatprep.subr.bf16.mxu0 0
        %1891 = vmatpush2.bf16.msra.mxu0 0
        %1892 = vmatprep.subr.bf16.mxu0 0
        %1893 = vmatpush2.bf16.msra.mxu0 0
        %1894 = vmatprep.subr.bf16.mxu0 0
        %1895 = vmatpush2.bf16.msra.mxu0 0
        %1896 = vmatprep.subr.bf16.mxu0 0
        %1897 = vmatpush2.bf16.msra.mxu0 0
        %1898 = vmatprep.mubr.bf16.mxu0 0
        %1899 = vmatmul.mubr.bf16.gmra.mxu0 %v1336
        %v1900 = vpop.f32.mrf.mxu0
        %v1901 = vadd.f32 0.0, %v1900
        %v1902 = vpop.f32.mrf.mxu0
        %v1903 = vpop.f32.mrf.mxu0
        %v1904 = vadd.f32 0.0, %v1903
        %v1905 = vpop.f32.mrf.mxu0
        %1906 = vmatprep.mubr.bf16.mxu0 0
        %1907 = vmatmul.mubr.bf16.gmra.mxu0 %v1337
        %v1908 = vpop.f32.mrf.mxu0
        %v1909 = vadd.f32 0.0, %v1908
        %v1910 = vpop.f32.mrf.mxu0
        %v1911 = vpop.f32.mrf.mxu0
        %v1912 = vadd.f32 0.0, %v1911
        %v1913 = vpop.f32.mrf.mxu0
        %1914 = vmatprep.mubr.bf16.mxu0 0
        %1915 = vmatmul.mubr.bf16.gmra.mxu0 %v1338
        %v1916 = vpop.f32.mrf.mxu0
        %v1917 = vadd.f32 0.0, %v1916
        %v1918 = vpop.f32.mrf.mxu0
        %v1919 = vpop.f32.mrf.mxu0
        %v1920 = vadd.f32 0.0, %v1919
        %v1921 = vpop.f32.mrf.mxu0
        %1922 = vmatprep.mubr.bf16.mxu0 0
        %1923 = vmatmul.mubr.bf16.gmra.mxu0 %v1339
        %v1924 = vpop.f32.mrf.mxu0
        %v1925 = vadd.f32 0.0, %v1924
        %v1926 = vpop.f32.mrf.mxu0
        %v1927 = vpop.f32.mrf.mxu0
        %v1928 = vadd.f32 0.0, %v1927
        %v1929 = vpop.f32.mrf.mxu0
        %1930 = vmatprep.mubr.bf16.mxu0 0
        %1931 = vmatmul.mubr.bf16.gmra.mxu0 %v1340
        %v1932 = vpop.f32.mrf.mxu0
        %v1933 = vadd.f32 0.0, %v1932
        %v1934 = vpop.f32.mrf.mxu0
        %v1935 = vpop.f32.mrf.mxu0
        %v1936 = vadd.f32 0.0, %v1935
        %v1937 = vpop.f32.mrf.mxu0
        %1938 = vmatprep.mubr.bf16.mxu0 0
        %1939 = vmatmul.mubr.bf16.gmra.mxu0 %v1341
        %v1940 = vpop.f32.mrf.mxu0
        %v1941 = vadd.f32 0.0, %v1940
        %v1942 = vpop.f32.mrf.mxu0
        %v1943 = vpop.f32.mrf.mxu0
        %v1944 = vadd.f32 0.0, %v1943
        %v1945 = vpop.f32.mrf.mxu0
        %1946 = vmatprep.mubr.bf16.mxu0 0
        %1947 = vmatmul.mubr.bf16.gmra.mxu0 %v1342
        %v1948 = vpop.f32.mrf.mxu0
        %v1949 = vadd.f32 0.0, %v1948
        %v1950 = vpop.f32.mrf.mxu0
        %v1951 = vpop.f32.mrf.mxu0
        %v1952 = vadd.f32 0.0, %v1951
        %v1953 = vpop.f32.mrf.mxu0
        %1954 = vmatprep.mubr.bf16.mxu0 0
        %1955 = vmatmul.mubr.bf16.gmra.mxu0 %v1343
        %v1956 = vpop.f32.mrf.mxu0
        %v1957 = vadd.f32 0.0, %v1956
        %v1958 = vpop.f32.mrf.mxu0
        %v1959 = vpop.f32.mrf.mxu0
        %v1960 = vadd.f32 0.0, %v1959
        %v1961 = vpop.f32.mrf.mxu0
        %1962 = vmatprep.mubr.bf16.mxu0 0
        %1963 = vmatmul.mubr.bf16.gmra.mxu0 %v1344
        %v1964 = vpop.f32.mrf.mxu0
        %v1965 = vadd.f32 0.0, %v1964
        %v1966 = vpop.f32.mrf.mxu0
        %v1967 = vpop.f32.mrf.mxu0
        %v1968 = vadd.f32 0.0, %v1967
        %v1969 = vpop.f32.mrf.mxu0
        %1970 = vmatprep.mubr.bf16.mxu0 0
        %1971 = vmatmul.mubr.bf16.gmra.mxu0 %v1345
        %v1972 = vpop.f32.mrf.mxu0
        %v1973 = vadd.f32 0.0, %v1972
        %v1974 = vpop.f32.mrf.mxu0
        %v1975 = vpop.f32.mrf.mxu0
        %v1976 = vadd.f32 0.0, %v1975
        %v1977 = vpop.f32.mrf.mxu0
        %1978 = vmatprep.mubr.bf16.mxu0 0
        %1979 = vmatmul.mubr.bf16.gmra.mxu0 %v1346
        %v1980 = vpop.f32.mrf.mxu0
        %v1981 = vadd.f32 0.0, %v1980
        %v1982 = vpop.f32.mrf.mxu0
        %v1983 = vpop.f32.mrf.mxu0
        %v1984 = vadd.f32 0.0, %v1983
        %v1985 = vpop.f32.mrf.mxu0
        %1986 = vmatprep.mubr.bf16.mxu0 0
        %1987 = vmatmul.mubr.bf16.gmra.mxu0 %v1347
        %v1988 = vpop.f32.mrf.mxu0
        %v1989 = vadd.f32 0.0, %v1988
        %v1990 = vpop.f32.mrf.mxu0
        %v1991 = vpop.f32.mrf.mxu0
        %v1992 = vadd.f32 0.0, %v1991
        %v1993 = vpop.f32.mrf.mxu0
        %1994 = vmatprep.mubr.bf16.mxu0 0
        %1995 = vmatmul.mubr.bf16.gmra.mxu0 %v1348
        %v1996 = vpop.f32.mrf.mxu0
        %v1997 = vadd.f32 0.0, %v1996
        %v1998 = vpop.f32.mrf.mxu0
        %v1999 = vpop.f32.mrf.mxu0
        %v2000 = vadd.f32 0.0, %v1999
        %v2001 = vpop.f32.mrf.mxu0
        %2002 = vmatprep.mubr.bf16.mxu0 0
        %2003 = vmatmul.mubr.bf16.gmra.mxu0 %v1349
        %v2004 = vpop.f32.mrf.mxu0
        %v2005 = vadd.f32 0.0, %v2004
        %v2006 = vpop.f32.mrf.mxu0
        %v2007 = vpop.f32.mrf.mxu0
        %v2008 = vadd.f32 0.0, %v2007
        %v2009 = vpop.f32.mrf.mxu0
        %2010 = vmatprep.mubr.bf16.mxu0 0
        %2011 = vmatmul.mubr.bf16.gmra.mxu0 %v1350
        %v2012 = vpop.f32.mrf.mxu0
        %v2013 = vadd.f32 0.0, %v2012
        %v2014 = vpop.f32.mrf.mxu0
        %v2015 = vpop.f32.mrf.mxu0
        %v2016 = vadd.f32 0.0, %v2015
        %v2017 = vpop.f32.mrf.mxu0
        %2018 = vmatprep.mubr.bf16.mxu0 0
        %2019 = vmatmul.mubr.bf16.gmra.mxu0 %v1351
        %v2020 = vpop.f32.mrf.mxu0
        %v2021 = vadd.f32 0.0, %v2020
        %v2022 = vpop.f32.mrf.mxu0
        %v2023 = vpop.f32.mrf.mxu0
        %v2024 = vadd.f32 0.0, %v2023
        %v2025 = vpop.f32.mrf.mxu0
        %2026 = vdwg.mxu0
        %v2027 = vadd.f32 %v1676, %v1901
        %v2028 = vadd.f32 %v1679, %v1904
        %v2029 = vadd.f32 %v1684, %v1909
        %v2030 = vadd.f32 %v1687, %v1912
        %v2031 = vadd.f32 %v1692, %v1917
        %v2032 = vadd.f32 %v1695, %v1920
        %v2033 = vadd.f32 %v1700, %v1925
        %v2034 = vadd.f32 %v1703, %v1928
        %v2035 = vadd.f32 %v1708, %v1933
        %v2036 = vadd.f32 %v1711, %v1936
        %v2037 = vadd.f32 %v1716, %v1941
        %v2038 = vadd.f32 %v1719, %v1944
        %v2039 = vadd.f32 %v1724, %v1949
        %v2040 = vadd.f32 %v1727, %v1952
        %v2041 = vadd.f32 %v1732, %v1957
        %v2042 = vadd.f32 %v1735, %v1960
        %v2043 = vadd.f32 %v1740, %v1965
        %v2044 = vadd.f32 %v1743, %v1968
        %v2045 = vadd.f32 %v1748, %v1973
        %v2046 = vadd.f32 %v1751, %v1976
        %v2047 = vadd.f32 %v1756, %v1981
        %v2048 = vadd.f32 %v1759, %v1984
        %v2049 = vadd.f32 %v1764, %v1989
        %v2050 = vadd.f32 %v1767, %v1992
        %v2051 = vadd.f32 %v1772, %v1997
        %v2052 = vadd.f32 %v1775, %v2000
        %v2053 = vadd.f32 %v1780, %v2005
        %v2054 = vadd.f32 %v1783, %v2008
        %v2055 = vadd.f32 %v1788, %v2013
        %v2056 = vadd.f32 %v1791, %v2016
        %v2057 = vadd.f32 %v1796, %v2021
        %v2058 = vadd.f32 %v1799, %v2024
        %2059 = vst.msk [vmem:[%s324] sm:$0xff] %vm413, %v2027
        %2060 = vst.msk [vmem:[%s324 + $0x8] sm:$0xff] %vm413, %v2028
        %2061 = vst.msk [vmem:[%s324 + $0x10] sm:$0xff] %vm413, %v2029
        %2062 = vst.msk [vmem:[%s324 + $0x18] sm:$0xff] %vm413, %v2030
        %2063 = vst.msk [vmem:[%s324 + $0x20] sm:$0xff] %vm413, %v2031
        %2064 = vst.msk [vmem:[%s324 + $0x28] sm:$0xff] %vm413, %v2032
        %2065 = vst.msk [vmem:[%s324 + $0x30] sm:$0xff] %vm413, %v2033
        %2066 = vst.msk [vmem:[%s324 + $0x38] sm:$0xff] %vm413, %v2034
        %2067 = vst.msk [vmem:[%s324 + $0x40] sm:$0xff] %vm413, %v2035
        %2068 = vst.msk [vmem:[%s324 + $0x48] sm:$0xff] %vm413, %v2036
        %2069 = vst.msk [vmem:[%s324 + $0x50] sm:$0xff] %vm413, %v2037
        %2070 = vst.msk [vmem:[%s324 + $0x58] sm:$0xff] %vm413, %v2038
        %2071 = vst.msk [vmem:[%s324 + $0x60] sm:$0xff] %vm413, %v2039
        %2072 = vst.msk [vmem:[%s324 + $0x68] sm:$0xff] %vm413, %v2040
        %2073 = vst.msk [vmem:[%s324 + $0x70] sm:$0xff] %vm413, %v2041
        %2074 = vst.msk [vmem:[%s324 + $0x78] sm:$0xff] %vm413, %v2042
        %2075 = vst.msk [vmem:[%s324 + $0x80] sm:$0xff] %vm413, %v2043
        %2076 = vst.msk [vmem:[%s324 + $0x88] sm:$0xff] %vm413, %v2044
        %2077 = vst.msk [vmem:[%s324 + $0x90] sm:$0xff] %vm413, %v2045
        %2078 = vst.msk [vmem:[%s324 + $0x98] sm:$0xff] %vm413, %v2046
        %2079 = vst.msk [vmem:[%s324 + $0xa0] sm:$0xff] %vm413, %v2047
        %2080 = vst.msk [vmem:[%s324 + $0xa8] sm:$0xff] %vm413, %v2048
        %2081 = vst.msk [vmem:[%s324 + $0xb0] sm:$0xff] %vm413, %v2049
        %2082 = vst.msk [vmem:[%s324 + $0xb8] sm:$0xff] %vm413, %v2050
        %2083 = vst.msk [vmem:[%s324 + $0xc0] sm:$0xff] %vm413, %v2051
        %2084 = vst.msk [vmem:[%s324 + $0xc8] sm:$0xff] %vm413, %v2052
        %2085 = vst.msk [vmem:[%s324 + $0xd0] sm:$0xff] %vm413, %v2053
        %2086 = vst.msk [vmem:[%s324 + $0xd8] sm:$0xff] %vm413, %v2054
        %2087 = vst.msk [vmem:[%s324 + $0xe0] sm:$0xff] %vm413, %v2055
        %2088 = vst.msk [vmem:[%s324 + $0xe8] sm:$0xff] %vm413, %v2056
        %2089 = vst.msk [vmem:[%s324 + $0xf0] sm:$0xff] %vm413, %v2057
        %2090 = vst.msk [vmem:[%s324 + $0xf8] sm:$0xff] %vm413, %v2058
        %vm2091 = vcmask 7168
        %2092 = vst.msk [vmem:[%s343] sm:$0xff] %vm2091, %v805
        %2093 = vst.msk [vmem:[%s343 + $0x8] sm:$0xff] %vm2091, %v819
        %2094 = vst.msk [vmem:[%s343 + $0x10] sm:$0xff] %vm2091, %v833
        %2095 = vst.msk [vmem:[%s343 + $0x18] sm:$0xff] %vm2091, %v847
        %2096 = vst.msk [vmem:[%s343 + $0x20] sm:$0xff] %vm2091, %v861
        %2097 = vst.msk [vmem:[%s343 + $0x28] sm:$0xff] %vm2091, %v875
        %2098 = vst.msk [vmem:[%s343 + $0x30] sm:$0xff] %vm2091, %v889
        %2099 = vst.msk [vmem:[%s343 + $0x38] sm:$0xff] %vm2091, %v903
        %2100 = vst.msk [vmem:[%s343 + $0x40] sm:$0xff] %vm2091, %v917
        %2101 = vst.msk [vmem:[%s343 + $0x48] sm:$0xff] %vm2091, %v931
        %2102 = vst.msk [vmem:[%s343 + $0x50] sm:$0xff] %vm2091, %v945
        %2103 = vst.msk [vmem:[%s343 + $0x58] sm:$0xff] %vm2091, %v959
        %2104 = vst.msk [vmem:[%s343 + $0x60] sm:$0xff] %vm2091, %v973
        %2105 = vst.msk [vmem:[%s343 + $0x68] sm:$0xff] %vm2091, %v987
        %2106 = vst.msk [vmem:[%s343 + $0x70] sm:$0xff] %vm2091, %v1001
        %2107 = vst.msk [vmem:[%s343 + $0x78] sm:$0xff] %vm2091, %v1015
        %2108 = vst.msk [vmem:[%s343 + $0x80] sm:$0xff] %vm2091, %v1029
        %2109 = vst.msk [vmem:[%s343 + $0x88] sm:$0xff] %vm2091, %v1043
        %2110 = vst.msk [vmem:[%s343 + $0x90] sm:$0xff] %vm2091, %v1057
        %2111 = vst.msk [vmem:[%s343 + $0x98] sm:$0xff] %vm2091, %v1071
        %2112 = vst.msk [vmem:[%s343 + $0xa0] sm:$0xff] %vm2091, %v1085
        %2113 = vst.msk [vmem:[%s343 + $0xa8] sm:$0xff] %vm2091, %v1099
        %2114 = vst.msk [vmem:[%s343 + $0xb0] sm:$0xff] %vm2091, %v1113
        %2115 = vst.msk [vmem:[%s343 + $0xb8] sm:$0xff] %vm2091, %v1127
        %2116 = vst.msk [vmem:[%s343 + $0xc0] sm:$0xff] %vm2091, %v1141
        %2117 = vst.msk [vmem:[%s343 + $0xc8] sm:$0xff] %vm2091, %v1155
        %2118 = vst.msk [vmem:[%s343 + $0xd0] sm:$0xff] %vm2091, %v1169
        %2119 = vst.msk [vmem:[%s343 + $0xd8] sm:$0xff] %vm2091, %v1183
        %2120 = vst.msk [vmem:[%s343 + $0xe0] sm:$0xff] %vm2091, %v1197
        %2121 = vst.msk [vmem:[%s343 + $0xe8] sm:$0xff] %vm2091, %v1211
        %2122 = vst.msk [vmem:[%s343 + $0xf0] sm:$0xff] %vm2091, %v1225
        %2123 = vst.msk [vmem:[%s343 + $0xf8] sm:$0xff] %vm2091, %v1239
        %v2124 = vsub.f32 %v2027, %v349
        %v2125 = vsub.f32 %v2028, %v350
        %v2126 = vsub.f32 %v2029, %v351
        %v2127 = vsub.f32 %v2030, %v352
        %v2128 = vsub.f32 %v2031, %v353
        %v2129 = vsub.f32 %v2032, %v354
        %v2130 = vsub.f32 %v2033, %v355
        %v2131 = vsub.f32 %v2034, %v356
        %v2132 = vsub.f32 %v2035, %v357
        %v2133 = vsub.f32 %v2036, %v358
        %v2134 = vsub.f32 %v2037, %v359
        %v2135 = vsub.f32 %v2038, %v360
        %v2136 = vsub.f32 %v2039, %v361
        %v2137 = vsub.f32 %v2040, %v362
        %v2138 = vsub.f32 %v2041, %v363
        %v2139 = vsub.f32 %v2042, %v364
        %v2140 = vsub.f32 %v2043, %v365
        %v2141 = vsub.f32 %v2044, %v366
        %v2142 = vsub.f32 %v2045, %v367
        %v2143 = vsub.f32 %v2046, %v368
        %v2144 = vsub.f32 %v2047, %v369
        %v2145 = vsub.f32 %v2048, %v370
        %v2146 = vsub.f32 %v2049, %v371
        %v2147 = vsub.f32 %v2050, %v372
        %v2148 = vsub.f32 %v2051, %v373
        %v2149 = vsub.f32 %v2052, %v374
        %v2150 = vsub.f32 %v2053, %v375
        %v2151 = vsub.f32 %v2054, %v376
        %v2152 = vsub.f32 %v2055, %v377
        %v2153 = vsub.f32 %v2056, %v378
        %v2154 = vsub.f32 %v2057, %v379
        %v2155 = vsub.f32 %v2058, %v380
        %v2156 = vmul.f32 %v2124, %v2124
        %v2157 = vmul.f32 %v2125, %v2125
        %v2158 = vmul.f32 %v2126, %v2126
        %v2159 = vmul.f32 %v2127, %v2127
        %v2160 = vmul.f32 %v2128, %v2128
        %v2161 = vmul.f32 %v2129, %v2129
        %v2162 = vmul.f32 %v2130, %v2130
        %v2163 = vmul.f32 %v2131, %v2131
        %v2164 = vmul.f32 %v2132, %v2132
        %v2165 = vmul.f32 %v2133, %v2133
        %v2166 = vmul.f32 %v2134, %v2134
        %v2167 = vmul.f32 %v2135, %v2135
        %v2168 = vmul.f32 %v2136, %v2136
        %v2169 = vmul.f32 %v2137, %v2137
        %v2170 = vmul.f32 %v2138, %v2138
        %v2171 = vmul.f32 %v2139, %v2139
        %v2172 = vmul.f32 %v2140, %v2140
        %v2173 = vmul.f32 %v2141, %v2141
        %v2174 = vmul.f32 %v2142, %v2142
        %v2175 = vmul.f32 %v2143, %v2143
        %v2176 = vmul.f32 %v2144, %v2144
        %v2177 = vmul.f32 %v2145, %v2145
        %v2178 = vmul.f32 %v2146, %v2146
        %v2179 = vmul.f32 %v2147, %v2147
        %v2180 = vmul.f32 %v2148, %v2148
        %v2181 = vmul.f32 %v2149, %v2149
        %v2182 = vmul.f32 %v2150, %v2150
        %v2183 = vmul.f32 %v2151, %v2151
        %v2184 = vmul.f32 %v2152, %v2152
        %v2185 = vmul.f32 %v2153, %v2153
        %v2186 = vmul.f32 %v2154, %v2154
        %v2187 = vmul.f32 %v2155, %v2155
        %v2188 = vsel %vm413, %v2156, 0.0
        %v2189 = vsel %vm413, %v2157, 0.0
        %v2190 = vadd.f32 %v2188, %v2189
        %v2191 = vsel %vm413, %v2158, 0.0
        %v2192 = vadd.f32 %v2190, %v2191
        %v2193 = vsel %vm413, %v2159, 0.0
        %v2194 = vadd.f32 %v2192, %v2193
        %v2195 = vsel %vm413, %v2160, 0.0
        %v2196 = vadd.f32 %v2194, %v2195
        %v2197 = vsel %vm413, %v2161, 0.0
        %v2198 = vadd.f32 %v2196, %v2197
        %v2199 = vsel %vm413, %v2162, 0.0
        %v2200 = vadd.f32 %v2198, %v2199
        %v2201 = vsel %vm413, %v2163, 0.0
        %v2202 = vadd.f32 %v2200, %v2201
        %v2203 = vsel %vm413, %v2164, 0.0
        %v2204 = vadd.f32 %v2202, %v2203
        %v2205 = vsel %vm413, %v2165, 0.0
        %v2206 = vadd.f32 %v2204, %v2205
        %v2207 = vsel %vm413, %v2166, 0.0
        %v2208 = vadd.f32 %v2206, %v2207
        %v2209 = vsel %vm413, %v2167, 0.0
        %v2210 = vadd.f32 %v2208, %v2209
        %v2211 = vsel %vm413, %v2168, 0.0
        %v2212 = vadd.f32 %v2210, %v2211
        %v2213 = vsel %vm413, %v2169, 0.0
        %v2214 = vadd.f32 %v2212, %v2213
        %v2215 = vsel %vm413, %v2170, 0.0
        %v2216 = vadd.f32 %v2214, %v2215
        %v2217 = vsel %vm413, %v2171, 0.0
        %v2218 = vadd.f32 %v2216, %v2217
        %v2219 = vsel %vm413, %v2172, 0.0
        %v2220 = vadd.f32 %v2218, %v2219
        %v2221 = vsel %vm413, %v2173, 0.0
        %v2222 = vadd.f32 %v2220, %v2221
        %v2223 = vsel %vm413, %v2174, 0.0
        %v2224 = vadd.f32 %v2222, %v2223
        %v2225 = vsel %vm413, %v2175, 0.0
        %v2226 = vadd.f32 %v2224, %v2225
        %v2227 = vsel %vm413, %v2176, 0.0
        %v2228 = vadd.f32 %v2226, %v2227
        %v2229 = vsel %vm413, %v2177, 0.0
        %v2230 = vadd.f32 %v2228, %v2229
        %v2231 = vsel %vm413, %v2178, 0.0
        %v2232 = vadd.f32 %v2230, %v2231
        %v2233 = vsel %vm413, %v2179, 0.0
        %v2234 = vadd.f32 %v2232, %v2233
        %v2235 = vsel %vm413, %v2180, 0.0
        %v2236 = vadd.f32 %v2234, %v2235
        %v2237 = vsel %vm413, %v2181, 0.0
        %v2238 = vadd.f32 %v2236, %v2237
        %v2239 = vsel %vm413, %v2182, 0.0
        %v2240 = vadd.f32 %v2238, %v2239
        %v2241 = vsel %vm413, %v2183, 0.0
        %v2242 = vadd.f32 %v2240, %v2241
        %v2243 = vsel %vm413, %v2184, 0.0
        %v2244 = vadd.f32 %v2242, %v2243
        %v2245 = vsel %vm413, %v2185, 0.0
        %v2246 = vadd.f32 %v2244, %v2245
        %v2247 = vsel %vm413, %v2186, 0.0
        %v2248 = vadd.f32 %v2246, %v2247
        %v2249 = vsel %vm413, %v2187, 0.0
        %v2250 = vadd.f32 %v2248, %v2249
        %v2251 = vrot.slane %v2250, 4
        %v2252 = vadd.f32 %v2250, %v2251
        %v2253 = vrot.slane %v2252, 2
        %v2254 = vadd.f32 %v2252, %v2253
        %v2255 = vrot.slane %v2254, 1
        %v2256 = vadd.f32 %v2254, %v2255
        %vm2257 = vcmask 253952
        %2258 = vst.msk [vmem:[%s347] sm:$0x1] %vm2257, %v2256
        %s2259 = sand.u32 %s165, 1
        %s2260 = scalar_lea.sflag [#allocation4], %s2259
        %s2261 = sand.u32 %s165, 1
        %s2262 = smul.addr %s2261, 256
        %s2263 = scalar_lea.vmem [#allocation5], %s2262
        %s2264 = smul.u32 32, %s26
        %p2265 = scmp.lt.s32.totalorder %s2264, 63
        %s2266 = scalar_select %p2265, %s2264, 63
        %s2267 = smul.addr %s2266, 8
        %s2268 = scalar_lea.vmem %s7, %s2267
        %p2269 = scmp.lt.s32.totalorder %s26, 1
        %s2270 = scalar_select %p2269, %s26, 1
        %s2271 = scalar_lea.vmem %s8, %s2270
        // Predicated region
        $region49: #{quantize_forward.1} parent=43 // pred_check
          %p2272 = pneg %p175
        $region50: #{quantize_forward.1} parent=43 // pred_check_branch
          %2274 = sbr.rel (%p2272) target = $region52
        $region51: #{quantize_forward.1} parent=43 // pred_region
          %s2275 = smul.u32 32, %s26
          %s2277 = ssub.s32 4096, 4096
          %2278 = vsyncadd %s2260, %s2277
          %s2279 = smul.addr %s2275, 128
          %s2280 = scalar_lea.hbm %s6, %s2279
          %s2281 = sshll.u32 %s2263, 4
          %s2282 = int_to_ptr.vmem [resolvable:$true] %s2281
          %2287 = dma.vmem_to_hbm [thread:$0]  %s2282, 4096, %s2280, %s2260, 128, 128, 8
        $region52: #{quantize_forward.1} parent=43 // pred_fallthru
          _
        // Predicated region
        $region53: #{quantize_forward.1} parent=43 // pred_check
          %p2288 = pneg %p201
        $region54: #{quantize_forward.1} parent=43 // pred_check_branch
          %2290 = sbr.rel (%p2288) target = $region56
        $region55: #{quantize_forward.1} parent=43 // pred_region
          %s2291 = smul.u32 32, %s26
        $region56: #{quantize_forward.1} parent=43 // pred_fallthru
          _
        // Predicated region
        $region57: #{quantize_forward.1} parent=43 // pred_check
          %p2292 = pneg %p227
        $region58: #{quantize_forward.1} parent=43 // pred_check_branch
          %2294 = sbr.rel (%p2292) target = $region60
        $region59: #{quantize_forward.1} parent=43 // pred_region
          _
        $region60: #{quantize_forward.1} parent=43 // pred_fallthru
          _
      $region44: #{quantize_forward.1} parent=5 // pred_fallthru
        _
      %p2295 = scmp.le.s32.totalorder 2, %s21
      // Predicated region
      $region61: #{quantize_forward.1} parent=5 // pred_check
        %p2296 = pneg %p2295
      $region62: #{quantize_forward.1} parent=5 // pred_check_branch
        %2298 = sbr.rel (%p2296) target = $region64
      $region63: #{quantize_forward.1} parent=5 // pred_region
        %s2299 = ssub.s32 %s21, 2
        // Predicated region
        $region65: #{quantize_forward.1} parent=63 // pred_check
          %p2300 = pneg %p181
        $region66: #{quantize_forward.1} parent=63 // pred_check_branch
          %2302 = sbr.rel (%p2300) target = $region68
        $region67: #{quantize_forward.1} parent=63 // pred_region
          %s2303 = sand.u32 %s166, 1
          %s2304 = scalar_lea.sflag [#allocation4], %s2303
          %s2305 = sand.u32 %s166, 1
          %s2306 = smul.addr %s2305, 256
          %s2307 = scalar_lea.vmem [#allocation5], %s2306
          %2308 = dma.done %s2304, 4096
        $region68: #{quantize_forward.1} parent=63 // pred_fallthru
          _
        // Predicated region
        $region69: #{quantize_forward.1} parent=63 // pred_check
          %p2309 = pneg %p207
        $region70: #{quantize_forward.1} parent=63 // pred_check_branch
          %2311 = sbr.rel (%p2309) target = $region72
        $region71: #{quantize_forward.1} parent=63 // pred_region
          %s2312 = smul.u32 32, %s27
          %p2313 = scmp.lt.s32.totalorder %s2312, 63
          %s2314 = scalar_select %p2313, %s2312, 63
          %s2315 = smul.addr %s2314, 8
          %s2316 = scalar_lea.vmem %s7, %s2315
        $region72: #{quantize_forward.1} parent=63 // pred_fallthru
          _
        // Predicated region
        $region73: #{quantize_forward.1} parent=63 // pred_check
          %p2317 = pneg %p233
        $region74: #{quantize_forward.1} parent=63 // pred_check_branch
          %2319 = sbr.rel (%p2317) target = $region76
        $region75: #{quantize_forward.1} parent=63 // pred_region
          %p2320 = scmp.lt.s32.totalorder %s27, 1
          %s2321 = scalar_select %p2320, %s27, 1
          %s2322 = scalar_lea.vmem %s8, %s2321
        $region76: #{quantize_forward.1} parent=63 // pred_fallthru
          _
      $region64: #{quantize_forward.1} parent=5 // pred_fallthru
        _
    $region6: #{quantize_forward.1} parent=1 // loop_footer
      %s25 = sadd.s32 1, %s21
    $region7: #{quantize_forward.1} parent=1 // loop_footer_branch
      %20 = sbr.rel target = $region3
    $region8: #{quantize_forward.1} parent=1 // loop_exit
      _
    %2323 = vsyncpa [#allocation3], 1
    %s2324 = scalar_lea.sflag [#allocation3], 1
    %2325 = vsyncpa %s2324, 1
    %2326 = vsyncpa [#allocation4], 1
    %s2327 = scalar_lea.sflag [#allocation4], 1
    %2328 = vsyncpa %s2327, 1

</llo_original>
